<compile_context>
chip_gen: v7x
topology: tpu7x:2x2x1
jax: 0.10.0
libtpu: 0.0.40
codegen_flags: <defaults>
</compile_context>

<pallas_src>
import functools
import math

import jax
import jax.numpy as jnp
from jax import lax
from jax.experimental import pallas as pl
from jax.experimental.pallas import tpu as pltpu


# ---------------------------------------------------------------------------
# Fused kernel: QKV projection + scaled-dot-product attention + output proj
# ---------------------------------------------------------------------------
def _mha_fused_kernel(lens_ref, q_ref, k_ref, v_ref, wq_ref, wk_ref, wv_ref,
                      wo_ref, *rest, heads, d_attn, tq, mask_val, causal,
                      use_lens, compute_dtype, return_scores):
    """One (batch, q_tile) grid step.

    Ref shapes (leading batch dim squeezed by the BlockSpecs):
      lens_ref   : (b, 2) int32 in SMEM (scalar prefetch): [q_len, kv_len]
      q_ref      : (tq, d_in)            compute_dtype
      k_ref/v_ref: (l,  d_in)            compute_dtype
      wq/wk/wv   : (d_in, heads*d_attn)  compute_dtype, whole-array VMEM resident
      wo_ref     : (heads*d_attn, d_in)  compute_dtype, whole-array VMEM resident
      outputs    : [scores (heads, tq, l)] , out (tq, d_in)
      scratch    : kproj/vproj (l, heads*d_attn) compute_dtype  (per-batch cache)
    """
    if return_scores:
        scores_ref, out_ref, kproj_ref, vproj_ref = rest
    else:
        scores_ref = None
        out_ref, kproj_ref, vproj_ref = rest

    l = k_ref.shape[0]
    cd = compute_dtype
    f32 = jnp.float32
    qi = pl.program_id(1)

    # ---- K/V projections: computed once per batch (qi == 0), cached in VMEM ----
    @pl.when(qi == 0)
    def _():
        kproj_ref[...] = jnp.dot(k_ref[...], wk_ref[...],
                                 preferred_element_type=f32).astype(cd)
        vproj_ref[...] = jnp.dot(v_ref[...], wv_ref[...],
                                 preferred_element_type=f32).astype(cd)

    # ---- Q projection for this tile, 1/sqrt(d_attn) folded in once --------------
    scale = f32(1.0 / math.sqrt(d_attn))
    qproj = (jnp.dot(q_ref[...], wq_ref[...], preferred_element_type=f32)
             * scale).astype(cd)                             # (tq, heads*d_attn)

    # ---- mask built in-kernel: no (b, l, l) HBM mask traffic --------------------
    if causal or use_lens:
        row = qi * tq + lax.broadcasted_iota(jnp.int32, (tq, l), 0)
        col = lax.broadcasted_iota(jnp.int32, (tq, l), 1)
        parts = []
        if causal:
            parts.append(col > row)
        if use_lens:
            b_idx = pl.program_id(0)
            parts.append(row >= lens_ref[b_idx, 0])          # q rows past q_len
            parts.append(col >= lens_ref[b_idx, 1])          # kv cols past kv_len
        mask = functools.reduce(jnp.logical_or, parts)
    else:
        mask = None                                          # statically compiled out
    neg = f32(mask_val)

    # ---- per-head attention with proj_o accumulated in the loop (no concat) -----
    out_acc = jnp.zeros(out_ref.shape, dtype=f32)            # (tq, d_in)
    for h in range(heads):
        sl = slice(h * d_attn, (h + 1) * d_attn)
        qh = qproj[:, sl]                                    # (tq, d_attn) cd
        kh = kproj_ref[:, sl]                                # (l,  d_attn) cd
        vh = vproj_ref[:, sl]                                # (l,  d_attn) cd

        # Q @ K^T without materializing K^T: contract dim 1 of both operands.
        # TODO(synk): pad d_attn to 128 (zero cols of wq/wk/wv, zero rows of wo)
        # to fill the MXU contraction width when d_attn < 128.
        logits = lax.dot_general(
            qh, kh, dimension_numbers=(((1,), (1,)), ((), ())),
            preferred_element_type=f32)                      # (tq, l) f32, pre-scaled
        if mask is not None:
            logits = jnp.where(mask, neg, logits)

        # Numerically stable softmax in f32; reciprocal on the EUP slot.
        m = jnp.max(logits, axis=-1, keepdims=True)
        p = jnp.exp(logits - m)
        sm = p * pl.reciprocal(jnp.sum(p, axis=-1, keepdims=True), approx=True)
        if scores_ref is not None:
            scores_ref[h] = sm.astype(scores_ref.dtype)

        attn = jnp.dot(sm.astype(cd), vh, preferred_element_type=f32)  # (tq, d_attn)
        out_acc = out_acc + jnp.dot(attn.astype(cd), wo_ref[sl, :],
                                    preferred_element_type=f32)        # (tq, d_in)

    out_ref[...] = out_acc.astype(out_ref.dtype)


# ---------------------------------------------------------------------------
# VMEM-aware tiling helpers (generation-aware: v5e/v6e 128 MiB, v7x 64 MiB)
# ---------------------------------------------------------------------------
def _vmem_capacity_bytes():
    try:
        return int(pltpu.get_tpu_info().vmem_capacity_bytes)
    except Exception:
        return 64 * 1024 * 1024          # conservative fallback (v7x per-TC VMEM)


def _vmem_estimate(tq, l, d_in, hd, heads, cd_bytes, scores_bytes, out_bytes,
                   with_scores):
    est = 0
    est += 2 * tq * d_in * cd_bytes                   # q block (double-buffered)
    est += 2 * 2 * l * d_in * cd_bytes                # k, v blocks (double-buffered)
    est += 4 * d_in * hd * cd_bytes                   # weights (single VMEM copy)
    est += 2 * l * hd * cd_bytes                      # kproj/vproj scratch cache
    if with_scores:
        est += 2 * heads * tq * l * scores_bytes      # scores out block (dbl-buf)
    est += 2 * tq * d_in * out_bytes                  # output block (dbl-buf)
    est += 4 * (tq * hd + 2 * tq * l + tq * d_in)     # f32 intermediates (rough)
    return est


def _pick_q_tile(l, d_in, hd, heads, cd_bytes, scores_bytes, out_bytes,
                 with_scores, vmem_budget):
    divisors = [t for t in (512, 256, 128) if t <= l and l % t == 0]
    for t in divisors:
        if _vmem_estimate(t, l, d_in, hd, heads, cd_bytes, scores_bytes,
                          out_bytes, with_scores) <= vmem_budget:
            return t
    if divisors:
        return divisors[-1]
    # TODO(synk): cdiv grid + row masking for l not divisible by 128.
    return l


# ---------------------------------------------------------------------------
# Wrapper
# ---------------------------------------------------------------------------
def multi_head_attention(q, k, v, wq, wk, wv, wo_t, *, heads, d_attn,
                         causal=False, q_lens=None, kv_lens=None,
                         mask_val=-1e9, compute_dtype=jnp.bfloat16,
                         scores_dtype=jnp.float32, return_scores=True,
                         q_tile=None):
    """Returns (scores, output) like the PyTorch module.

    q, k, v : (b, l, d_in)
    wq/wk/wv: (d_in, heads*d_attn)   (Linear weights, pre-transposed)
    wo_t    : (heads*d_attn, d_in)   (proj_o weight, pre-transposed)
    If return_scores=False, scores is None (saves the (b,h,l,l) HBM writeback).
    """
    b, l, d_in = q.shape
    hd = heads * d_attn
    assert wq.shape == (d_in, hd) and wk.shape == (d_in, hd) and wv.shape == (d_in, hd)
    assert wo_t.shape == (hd, d_in)

    out_dtype = q.dtype
    cd = compute_dtype
    cd_bytes = jnp.dtype(cd).itemsize
    scores_bytes = jnp.dtype(scores_dtype).itemsize
    out_bytes = jnp.dtype(out_dtype).itemsize

    # Pre-cast inputs + weights to compute_dtype: halves HBM->VMEM bytes/residency.
    q = q.astype(cd); k = k.astype(cd); v = v.astype(cd)
    wq = wq.astype(cd); wk = wk.astype(cd); wv = wv.astype(cd); wo_t = wo_t.astype(cd)

    # Generation-aware q tiling + explicit scoped-VMEM limit.
    vmem_cap = _vmem_capacity_bytes()
    vmem_budget = max(vmem_cap - (16 << 20), 8 << 20)
    if q_tile is not None and q_tile <= l and l % q_tile == 0:
        tq = q_tile
    else:
        tq = _pick_q_tile(l, d_in, hd, heads, cd_bytes, scores_bytes, out_bytes,
                          return_scores, vmem_budget)
    n_qt = l // tq
    est = _vmem_estimate(tq, l, d_in, hd, heads, cd_bytes, scores_bytes,
                         out_bytes, return_scores)
    vmem_limit = int(min(vmem_cap - (8 << 20), max(est + (16 << 20), 32 << 20)))

    use_lens = (q_lens is not None) or (kv_lens is not None)
    q_lens_arr = (q_lens.astype(jnp.int32) if q_lens is not None
                  else jnp.full((b,), l, jnp.int32))
    kv_lens_arr = (kv_lens.astype(jnp.int32) if kv_lens is not None
                   else jnp.full((b,), l, jnp.int32))
    lens = jnp.stack([q_lens_arr, kv_lens_arr], axis=1)        # (b, 2) int32

    kernel = functools.partial(
        _mha_fused_kernel, heads=heads, d_attn=d_attn, tq=tq,
        mask_val=mask_val, causal=causal, use_lens=use_lens,
        compute_dtype=cd, return_scores=return_scores)

    # Whole-array VMEM residency for the grid-invariant weight operands
    # (no per-step pipelining / no second never-used buffer).
    w_spec = pl.BlockSpec(memory_space=pltpu.MemorySpace.VMEM)

    in_specs = [
        pl.BlockSpec((pl.Squeezed(), tq, d_in), lambda bi, qi, _lens: (bi, qi, 0)),  # q
        pl.BlockSpec((pl.Squeezed(), l, d_in), lambda bi, qi, _lens: (bi, 0, 0)),    # k
        pl.BlockSpec((pl.Squeezed(), l, d_in), lambda bi, qi, _lens: (bi, 0, 0)),    # v
        w_spec, w_spec, w_spec, w_spec,                                              # wq wk wv wo
    ]
    out_block = pl.BlockSpec((pl.Squeezed(), tq, d_in),
                             lambda bi, qi, _lens: (bi, qi, 0))
    if return_scores:
        out_specs = (
            pl.BlockSpec((pl.Squeezed(), heads, tq, l),
                         lambda bi, qi, _lens: (bi, 0, qi, 0)),
            out_block,
        )
        out_shape = (jax.ShapeDtypeStruct((b, heads, l, l), scores_dtype),
                     jax.ShapeDtypeStruct((b, l, d_in), out_dtype))
    else:
        out_specs = out_block
        out_shape = jax.ShapeDtypeStruct((b, l, d_in), out_dtype)

    grid_spec = pltpu.PrefetchScalarGridSpec(
        num_scalar_prefetch=1,
        grid=(b, n_qt),
        in_specs=in_specs,
        out_specs=out_specs,
        scratch_shapes=[pltpu.VMEM((l, hd), cd),    # projected K cache (per batch)
                        pltpu.VMEM((l, hd), cd)],   # projected V cache (per batch)
    )

    result = pl.pallas_call(
        kernel,
        out_shape=out_shape,
        grid_spec=grid_spec,
        compiler_params=pltpu.CompilerParams(
            # batch axis parallel (megacore / v7x 2-TC sharding); the q-tile axis
            # MUST be arbitrary because the K/V projection cache is carried across it.
            dimension_semantics=("parallel", "arbitrary"),
            vmem_limit_bytes=vmem_limit),
    )(lens, q, k, v, wq, wk, wv, wo_t)

    if return_scores:
        scores4, out = result
        # PyTorch returns scores with shape (b*heads, l, l) (contiguous reshape).
        return scores4.reshape(b * heads, l, l), out
    return None, result


# ---------------------------------------------------------------------------
# Pure-JAX reference (mirrors the PyTorch forward, same bf16/f32 precision)
# ---------------------------------------------------------------------------
def _reference(q, k, v, wq, wk, wv, wo_t, *, heads, d_attn, causal=False,
               q_lens=None, kv_lens=None, mask_val=-1e9,
               compute_dtype=jnp.bfloat16):
    b, l, d_in = q.shape
    cd = compute_dtype
    f32 = jnp.float32
    scale = f32(1.0 / math.sqrt(d_attn))

    def proj(x, w):
        y = jnp.dot(x.astype(cd), w.astype(cd), preferred_element_type=f32)
        return y.reshape(b, l, heads, d_attn).transpose(0, 2, 1, 3)

    # Fold the 1/sqrt(d_attn) scale into Q (mathematically identical to scaling
    # the logits, and matches the kernel's operation order).
    _q = (proj(q, wq) * scale).astype(cd)
    _k, _v = proj(k, wk).astype(cd), proj(v, wv).astype(cd)   # (b, h, l, d_attn)

    logits = jnp.einsum("bhqd,bhkd->bhqk", _q, _k, preferred_element_type=f32)

    mask = jnp.zeros((b, 1, l, l), dtype=bool)
    if causal:
        mask = mask | jnp.triu(jnp.ones((l, l), dtype=bool), k=1)[None, None]
    if q_lens is not None or kv_lens is not None:
        qv = (jnp.arange(l)[None, :] < q_lens[:, None]) if q_lens is not None \
            else jnp.ones((b, l), dtype=bool)
        kvv = (jnp.arange(l)[None, :] < kv_lens[:, None]) if kv_lens is not None \
            else jnp.ones((b, l), dtype=bool)
        mask = mask | ~(qv[:, None, :, None] & kvv[:, None, None, :])
    logits = jnp.where(mask, f32(mask_val), logits)

    scores = jax.nn.softmax(logits, axis=-1)                  # (b, h, l, l) f32
    attn = jnp.einsum("bhqk,bhkd->bhqd", scores.astype(cd), _v,
                      preferred_element_type=f32)
    merged = attn.transpose(0, 2, 1, 3).reshape(b, l, heads * d_attn)
    out = jnp.dot(merged.astype(cd), wo_t.astype(cd), preferred_element_type=f32)
    return scores.reshape(b * heads, l, l), out.astype(q.dtype)


if __name__ == "__main__":
    b, seq_len, d_in, d_attn, heads = 2, 8, 32, 16, 2
    mask_val = -1e9

    key = jax.random.PRNGKey(0)
    kq, kk, kv, kwq, kwk, kwv, kwo = jax.random.split(key, 7)

    q = jax.random.normal(kq, (b, seq_len, d_in), dtype=jnp.float32)
    k = jax.random.normal(kk, (b, seq_len, d_in), dtype=jnp.float32)
    v = jax.random.normal(kv, (b, seq_len, d_in), dtype=jnp.float32)

    # Bias-free Linear layers (module defaults); weights stored pre-transposed
    # so that y = x @ w  (torch: y = x @ W.T).
    wq = 0.05 * jax.random.normal(kwq, (d_in, heads * d_attn), dtype=jnp.float32)
    wk = 0.05 * jax.random.normal(kwk, (d_in, heads * d_attn), dtype=jnp.float32)
    wv = 0.05 * jax.random.normal(kwv, (d_in, heads * d_attn), dtype=jnp.float32)
    wo_t = 0.05 * jax.random.normal(kwo, (heads * d_attn, d_in), dtype=jnp.float32)

    # ---- case 1: module defaults (causal=False, q_lens=None, kv_lens=None) ---
    scores, output = multi_head_attention(
        q, k, v, wq, wk, wv, wo_t, heads=heads, d_attn=d_attn,
        causal=False, mask_val=mask_val)
    jax.block_until_ready((scores, output))

    ref_s, ref_o = _reference(q, k, v, wq, wk, wv, wo_t, heads=heads,
                              d_attn=d_attn, causal=False, mask_val=mask_val)
    assert scores.shape == (b * heads, seq_len, seq_len)
    assert output.shape == (b, seq_len, d_in)
    assert jnp.allclose(scores, ref_s, atol=5e-3, rtol=5e-3)
    assert jnp.allclose(output, ref_o, atol=5e-3, rtol=5e-3)

    # ---- case 2: causal + ragged lengths (exercises in-kernel mask gen) ------
    q_lens = jnp.array([6, 8], dtype=jnp.int32)
    kv_lens = jnp.array([8, 5], dtype=jnp.int32)
    scores_c, output_c = multi_head_attention(
        q, k, v, wq, wk, wv, wo_t, heads=heads, d_attn=d_attn,
        causal=True, q_lens=q_lens, kv_lens=kv_lens, mask_val=mask_val)
    jax.block_until_ready((scores_c, output_c))

    ref_sc, ref_oc = _reference(q, k, v, wq, wk, wv, wo_t, heads=heads,
                                d_attn=d_attn, causal=True, q_lens=q_lens,
                                kv_lens=kv_lens, mask_val=mask_val)
    assert jnp.allclose(scores_c, ref_sc, atol=5e-3, rtol=5e-3)
    assert jnp.allclose(output_c, ref_oc, atol=5e-3, rtol=5e-3)

    # ---- case 3: no scores output (HBM-writeback-free fast path) -------------
    _, output_ns = multi_head_attention(
        q, k, v, wq, wk, wv, wo_t, heads=heads, d_attn=d_attn,
        causal=False, mask_val=mask_val, return_scores=False)
    jax.block_until_ready(output_ns)
    assert jnp.allclose(output_ns, ref_o, atol=5e-3, rtol=5e-3)

    print("KERNEL_OK")
</pallas_src>

<mosaic_0001>
module attributes {stable_mosaic.version = 11 : i64} {
  func.func @_mha_fused_kernel(%arg0: i32, %arg1: i32, %arg2: memref<2x2xi32, #tpu.memory_space<smem>>, %arg3: memref<1x8x32xbf16, #tpu.memory_space<vmem>>, %arg4: memref<1x8x32xbf16, #tpu.memory_space<vmem>>, %arg5: memref<1x8x32xbf16, #tpu.memory_space<vmem>>, %arg6: memref<32x32xbf16, #tpu.memory_space<vmem>>, %arg7: memref<32x32xbf16, #tpu.memory_space<vmem>>, %arg8: memref<32x32xbf16, #tpu.memory_space<vmem>>, %arg9: memref<32x32xbf16, #tpu.memory_space<vmem>>, %arg10: memref<1x2x8x8xf32, #tpu.memory_space<vmem>>, %arg11: memref<1x8x32xf32, #tpu.memory_space<vmem>>, %arg12: memref<8x32xbf16, #tpu.memory_space<vmem>>, %arg13: memref<8x32xbf16, #tpu.memory_space<vmem>>) attributes {dimension_semantics = [#tpu.dimension_semantics<parallel>, #tpu.dimension_semantics<arbitrary>], iteration_bounds = array<i64: 2, 1>, scalar_prefetch = 1 : i64, scratch_operands = 2 : i64, tpu.core_type = #tpu.core_type<tc>, window_params = [{transform_indices = @transform_0, window_bounds = array<i64: 1, 8, 32>}, {transform_indices = @transform_1, window_bounds = array<i64: 1, 8, 32>}, {transform_indices = @transform_2, window_bounds = array<i64: 1, 8, 32>}, {pipeline_mode = #tpu.pipeline_mode<synchronous>, transform_indices = @transform_3, window_bounds = array<i64: 32, 32>}, {pipeline_mode = #tpu.pipeline_mode<synchronous>, transform_indices = @transform_4, window_bounds = array<i64: 32, 32>}, {pipeline_mode = #tpu.pipeline_mode<synchronous>, transform_indices = @transform_5, window_bounds = array<i64: 32, 32>}, {pipeline_mode = #tpu.pipeline_mode<synchronous>, transform_indices = @transform_6, window_bounds = array<i64: 32, 32>}, {transform_indices = @transform_7, window_bounds = array<i64: 1, 2, 8, 8>}, {transform_indices = @transform_8, window_bounds = array<i64: 1, 8, 32>}]} {
    %c0_i32 = arith.constant 0 : i32
    %0 = arith.cmpi eq, %arg1, %c0_i32 : i32
    %1 = arith.extui %0 : i1 to i32
    %c0_i32_0 = arith.constant 0 : i32
    %2 = arith.cmpi ne, %1, %c0_i32_0 : i32
    scf.if %2 {
      %c0_38 = arith.constant 0 : index
      %c0_39 = arith.constant 0 : index
      %c0_40 = arith.constant 0 : index
      %60 = vector.load %arg4[%c0_38, %c0_39, %c0_40] : memref<1x8x32xbf16, #tpu.memory_space<vmem>>, vector<1x8x32xbf16>
      %61 = vector.shape_cast %60 : vector<1x8x32xbf16> to vector<8x32xbf16>
      %c0_41 = arith.constant 0 : index
      %c0_42 = arith.constant 0 : index
      %62 = vector.load %arg7[%c0_41, %c0_42] : memref<32x32xbf16, #tpu.memory_space<vmem>>, vector<32x32xbf16>
      %cst_43 = arith.constant dense<0.000000e+00> : vector<8x32xf32>
      %63 = tpu.matmul %61, %62, %cst_43 {dimension_numbers = #tpu.dot_dimension_numbers<[1], [0], [0], [1], [0, 0, 1, 1], [], []>} : vector<8x32xbf16>, vector<32x32xbf16>, vector<8x32xf32> -> vector<8x32xf32>
      %64 = arith.truncf %63 : vector<8x32xf32> to vector<8x32xbf16>
      %c0_44 = arith.constant 0 : index
      %c0_45 = arith.constant 0 : index
      %65 = vector.load %arg12[%c0_44, %c0_45] : memref<8x32xbf16, #tpu.memory_space<vmem>>, vector<8x32xbf16>
      tpu.vector_store %arg12[%c0_44, %c0_45], %64 {strides = array<i32>} : memref<8x32xbf16, #tpu.memory_space<vmem>>, vector<8x32xbf16>,
      %c0_46 = arith.constant 0 : index
      %c0_47 = arith.constant 0 : index
      %c0_48 = arith.constant 0 : index
      %66 = vector.load %arg5[%c0_46, %c0_47, %c0_48] : memref<1x8x32xbf16, #tpu.memory_space<vmem>>, vector<1x8x32xbf16>
      %67 = vector.shape_cast %66 : vector<1x8x32xbf16> to vector<8x32xbf16>
      %c0_49 = arith.constant 0 : index
      %c0_50 = arith.constant 0 : index
      %68 = vector.load %arg8[%c0_49, %c0_50] : memref<32x32xbf16, #tpu.memory_space<vmem>>, vector<32x32xbf16>
      %cst_51 = arith.constant dense<0.000000e+00> : vector<8x32xf32>
      %69 = tpu.matmul %67, %68, %cst_51 {dimension_numbers = #tpu.dot_dimension_numbers<[1], [0], [0], [1], [0, 0, 1, 1], [], []>} : vector<8x32xbf16>, vector<32x32xbf16>, vector<8x32xf32> -> vector<8x32xf32>
      %70 = arith.truncf %69 : vector<8x32xf32> to vector<8x32xbf16>
      %c0_52 = arith.constant 0 : index
      %c0_53 = arith.constant 0 : index
      %71 = vector.load %arg13[%c0_52, %c0_53] : memref<8x32xbf16, #tpu.memory_space<vmem>>, vector<8x32xbf16>
      tpu.vector_store %arg13[%c0_52, %c0_53], %70 {strides = array<i32>} : memref<8x32xbf16, #tpu.memory_space<vmem>>, vector<8x32xbf16>,
    } else {
    }
    %c0 = arith.constant 0 : index
    %c0_1 = arith.constant 0 : index
    %c0_2 = arith.constant 0 : index
    %3 = vector.load %arg3[%c0, %c0_1, %c0_2] : memref<1x8x32xbf16, #tpu.memory_space<vmem>>, vector<1x8x32xbf16>
    %4 = vector.shape_cast %3 : vector<1x8x32xbf16> to vector<8x32xbf16>
    %c0_3 = arith.constant 0 : index
    %c0_4 = arith.constant 0 : index
    %5 = vector.load %arg6[%c0_3, %c0_4] : memref<32x32xbf16, #tpu.memory_space<vmem>>, vector<32x32xbf16>
    %cst = arith.constant dense<0.000000e+00> : vector<8x32xf32>
    %6 = tpu.matmul %4, %5, %cst {dimension_numbers = #tpu.dot_dimension_numbers<[1], [0], [0], [1], [0, 0, 1, 1], [], []>} : vector<8x32xbf16>, vector<32x32xbf16>, vector<8x32xf32> -> vector<8x32xf32>
    %cst_5 = arith.constant 2.500000e-01 : f32
    %7 = vector.broadcast %cst_5 : f32 to vector<8x32xf32>
    %8 = arith.mulf %6, %7 : vector<8x32xf32>
    %9 = arith.truncf %8 : vector<8x32xf32> to vector<8x32xbf16>
    %cst_6 = arith.constant 0.000000e+00 : f32
    %10 = vector.broadcast %cst_6 : f32 to vector<8x32xf32>
    %11 = vector.extract_strided_slice %9 {offsets = [0, 0], sizes = [8, 16], strides = [1, 1]} : vector<8x32xbf16> to vector<8x16xbf16>
    %c0_7 = arith.constant 0 : index
    %c0_8 = arith.constant 0 : index
    %12 = vector.load %arg12[%c0_7, %c0_8] : memref<8x32xbf16, #tpu.memory_space<vmem>>, vector<8x16xbf16>
    %c0_9 = arith.constant 0 : index
    %c0_10 = arith.constant 0 : index
    %13 = vector.load %arg13[%c0_9, %c0_10] : memref<8x32xbf16, #tpu.memory_space<vmem>>, vector<8x16xbf16>
    %cst_11 = arith.constant dense<0.000000e+00> : vector<8x8xf32>
    %14 = tpu.matmul %11, %12, %cst_11 {dimension_numbers = #tpu.dot_dimension_numbers<[1], [1], [0], [0], [0, 0, 1, 0], [], []>} : vector<8x16xbf16>, vector<8x16xbf16>, vector<8x8xf32> -> vector<8x8xf32>
    %cst_12 = arith.constant dense<0xFF800000> : vector<8xf32>
    %15 = vector.multi_reduction <maximumf>, %14, %cst_12 [1] : vector<8x8xf32> to vector<8xf32>
    %16 = vector.shape_cast %15 : vector<8xf32> to vector<8x1xf32>
    %17 = vector.broadcast %16 : vector<8x1xf32> to vector<8x8xf32>
    %18 = arith.subf %14, %17 : vector<8x8xf32>
    %19 = math.exp %18 : vector<8x8xf32>
    %cst_13 = arith.constant dense<0.000000e+00> : vector<8xf32>
    %20 = vector.multi_reduction <add>, %19, %cst_13 [1] : vector<8x8xf32> to vector<8xf32>
    %21 = vector.shape_cast %20 : vector<8xf32> to vector<8x1xf32>
    %22 = tpu.reciprocal %21 {approx = true} : vector<8x1xf32> -> vector<8x1xf32>
    %23 = vector.broadcast %22 : vector<8x1xf32> to vector<8x8xf32>
    %24 = arith.mulf %19, %23 : vector<8x8xf32>
    %c0_14 = arith.constant 0 : index
    %c0_15 = arith.constant 0 : index
    %c0_16 = arith.constant 0 : index
    %c0_17 = arith.constant 0 : index
    %25 = vector.load %arg10[%c0_14, %c0_15, %c0_16, %c0_17] : memref<1x2x8x8xf32, #tpu.memory_space<vmem>>, vector<1x1x8x8xf32>
    %26 = vector.shape_cast %25 : vector<1x1x8x8xf32> to vector<8x8xf32>
    %27 = vector.shape_cast %24 : vector<8x8xf32> to vector<1x1x8x8xf32>
    tpu.vector_store %arg10[%c0_14, %c0_15, %c0_16, %c0_17], %27 {strides = array<i32>} : memref<1x2x8x8xf32, #tpu.memory_space<vmem>>, vector<1x1x8x8xf32>,
    %28 = arith.truncf %24 : vector<8x8xf32> to vector<8x8xbf16>
    %cst_18 = arith.constant dense<0.000000e+00> : vector<8x16xf32>
    %29 = tpu.matmul %28, %13, %cst_18 {dimension_numbers = #tpu.dot_dimension_numbers<[1], [0], [0], [1], [0, 0, 1, 1], [], []>} : vector<8x8xbf16>, vector<8x16xbf16>, vector<8x16xf32> -> vector<8x16xf32>
    %30 = arith.truncf %29 : vector<8x16xf32> to vector<8x16xbf16>
    %c0_19 = arith.constant 0 : index
    %c0_20 = arith.constant 0 : index
    %31 = vector.load %arg9[%c0_19, %c0_20] : memref<32x32xbf16, #tpu.memory_space<vmem>>, vector<16x32xbf16>
    %cst_21 = arith.constant dense<0.000000e+00> : vector<8x32xf32>
    %32 = tpu.matmul %30, %31, %cst_21 {dimension_numbers = #tpu.dot_dimension_numbers<[1], [0], [0], [1], [0, 0, 1, 1], [], []>} : vector<8x16xbf16>, vector<16x32xbf16>, vector<8x32xf32> -> vector<8x32xf32>
    %33 = arith.addf %10, %32 : vector<8x32xf32>
    %34 = vector.extract_strided_slice %9 {offsets = [0, 16], sizes = [8, 16], strides = [1, 1]} : vector<8x32xbf16> to vector<8x16xbf16>
    %c0_22 = arith.constant 0 : index
    %c16 = arith.constant 16 : index
    %35 = vector.load %arg12[%c0_22, %c16] : memref<8x32xbf16, #tpu.memory_space<vmem>>, vector<8x16xbf16>
    %c0_23 = arith.constant 0 : index
    %c16_24 = arith.constant 16 : index
    %36 = vector.load %arg13[%c0_23, %c16_24] : memref<8x32xbf16, #tpu.memory_space<vmem>>, vector<8x16xbf16>
    %cst_25 = arith.constant dense<0.000000e+00> : vector<8x8xf32>
    %37 = tpu.matmul %34, %35, %cst_25 {dimension_numbers = #tpu.dot_dimension_numbers<[1], [1], [0], [0], [0, 0, 1, 0], [], []>} : vector<8x16xbf16>, vector<8x16xbf16>, vector<8x8xf32> -> vector<8x8xf32>
    %cst_26 = arith.constant dense<0xFF800000> : vector<8xf32>
    %38 = vector.multi_reduction <maximumf>, %37, %cst_26 [1] : vector<8x8xf32> to vector<8xf32>
    %39 = vector.shape_cast %38 : vector<8xf32> to vector<8x1xf32>
    %40 = vector.broadcast %39 : vector<8x1xf32> to vector<8x8xf32>
    %41 = arith.subf %37, %40 : vector<8x8xf32>
    %42 = math.exp %41 : vector<8x8xf32>
    %cst_27 = arith.constant dense<0.000000e+00> : vector<8xf32>
    %43 = vector.multi_reduction <add>, %42, %cst_27 [1] : vector<8x8xf32> to vector<8xf32>
    %44 = vector.shape_cast %43 : vector<8xf32> to vector<8x1xf32>
    %45 = tpu.reciprocal %44 {approx = true} : vector<8x1xf32> -> vector<8x1xf32>
    %46 = vector.broadcast %45 : vector<8x1xf32> to vector<8x8xf32>
    %47 = arith.mulf %42, %46 : vector<8x8xf32>
    %c0_28 = arith.constant 0 : index
    %c1 = arith.constant 1 : index
    %c0_29 = arith.constant 0 : index
    %c0_30 = arith.constant 0 : index
    %48 = vector.load %arg10[%c0_28, %c1, %c0_29, %c0_30] : memref<1x2x8x8xf32, #tpu.memory_space<vmem>>, vector<1x1x8x8xf32>
    %49 = vector.shape_cast %48 : vector<1x1x8x8xf32> to vector<8x8xf32>
    %50 = vector.shape_cast %47 : vector<8x8xf32> to vector<1x1x8x8xf32>
    tpu.vector_store %arg10[%c0_28, %c1, %c0_29, %c0_30], %50 {strides = array<i32>} : memref<1x2x8x8xf32, #tpu.memory_space<vmem>>, vector<1x1x8x8xf32>,
    %51 = arith.truncf %47 : vector<8x8xf32> to vector<8x8xbf16>
    %cst_31 = arith.constant dense<0.000000e+00> : vector<8x16xf32>
    %52 = tpu.matmul %51, %36, %cst_31 {dimension_numbers = #tpu.dot_dimension_numbers<[1], [0], [0], [1], [0, 0, 1, 1], [], []>} : vector<8x8xbf16>, vector<8x16xbf16>, vector<8x16xf32> -> vector<8x16xf32>
    %53 = arith.truncf %52 : vector<8x16xf32> to vector<8x16xbf16>
    %c16_32 = arith.constant 16 : index
    %c0_33 = arith.constant 0 : index
    %54 = vector.load %arg9[%c16_32, %c0_33] : memref<32x32xbf16, #tpu.memory_space<vmem>>, vector<16x32xbf16>
    %cst_34 = arith.constant dense<0.000000e+00> : vector<8x32xf32>
    %55 = tpu.matmul %53, %54, %cst_34 {dimension_numbers = #tpu.dot_dimension_numbers<[1], [0], [0], [1], [0, 0, 1, 1], [], []>} : vector<8x16xbf16>, vector<16x32xbf16>, vector<8x32xf32> -> vector<8x32xf32>
    %56 = arith.addf %33, %55 : vector<8x32xf32>
    %c0_35 = arith.constant 0 : index
    %c0_36 = arith.constant 0 : index
    %c0_37 = arith.constant 0 : index
    %57 = vector.load %arg11[%c0_35, %c0_36, %c0_37] : memref<1x8x32xf32, #tpu.memory_space<vmem>>, vector<1x8x32xf32>
    %58 = vector.shape_cast %57 : vector<1x8x32xf32> to vector<8x32xf32>
    %59 = vector.shape_cast %56 : vector<8x32xf32> to vector<1x8x32xf32>
    tpu.vector_store %arg11[%c0_35, %c0_36, %c0_37], %59 {strides = array<i32>} : memref<1x8x32xf32, #tpu.memory_space<vmem>>, vector<1x8x32xf32>,
    return
  }
  func.func @transform_0(%arg0: i32, %arg1: i32, %arg2: memref<2x2xi32, #tpu.memory_space<smem>>) -> (i32, i32, i32) {
    %c0_i32 = arith.constant 0 : i32
    %c0_i32_0 = arith.constant 0 : i32
    return %arg0, %arg1, %c0_i32 : i32, i32, i32
  }
  func.func @transform_1(%arg0: i32, %arg1: i32, %arg2: memref<2x2xi32, #tpu.memory_space<smem>>) -> (i32, i32, i32) {
    %c0_i32 = arith.constant 0 : i32
    %c0_i32_0 = arith.constant 0 : i32
    %c0_i32_1 = arith.constant 0 : i32
    return %arg0, %c0_i32, %c0_i32_0 : i32, i32, i32
  }
  func.func @transform_2(%arg0: i32, %arg1: i32, %arg2: memref<2x2xi32, #tpu.memory_space<smem>>) -> (i32, i32, i32) {
    %c0_i32 = arith.constant 0 : i32
    %c0_i32_0 = arith.constant 0 : i32
    %c0_i32_1 = arith.constant 0 : i32
    return %arg0, %c0_i32, %c0_i32_0 : i32, i32, i32
  }
  func.func @transform_3(%arg0: i32, %arg1: i32, %arg2: memref<2x2xi32, #tpu.memory_space<smem>>) -> (i32, i32) {
    %c0_i32 = arith.constant 0 : i32
    %c0_i32_0 = arith.constant 0 : i32
    %c0_i32_1 = arith.constant 0 : i32
    return %c0_i32, %c0_i32_0 : i32, i32
  }
  func.func @transform_4(%arg0: i32, %arg1: i32, %arg2: memref<2x2xi32, #tpu.memory_space<smem>>) -> (i32, i32) {
    %c0_i32 = arith.constant 0 : i32
    %c0_i32_0 = arith.constant 0 : i32
    %c0_i32_1 = arith.constant 0 : i32
    return %c0_i32, %c0_i32_0 : i32, i32
  }
  func.func @transform_5(%arg0: i32, %arg1: i32, %arg2: memref<2x2xi32, #tpu.memory_space<smem>>) -> (i32, i32) {
    %c0_i32 = arith.constant 0 : i32
    %c0_i32_0 = arith.constant 0 : i32
    %c0_i32_1 = arith.constant 0 : i32
    return %c0_i32, %c0_i32_0 : i32, i32
  }
  func.func @transform_6(%arg0: i32, %arg1: i32, %arg2: memref<2x2xi32, #tpu.memory_space<smem>>) -> (i32, i32) {
    %c0_i32 = arith.constant 0 : i32
    %c0_i32_0 = arith.constant 0 : i32
    %c0_i32_1 = arith.constant 0 : i32
    return %c0_i32, %c0_i32_0 : i32, i32
  }
  func.func @transform_7(%arg0: i32, %arg1: i32, %arg2: memref<2x2xi32, #tpu.memory_space<smem>>) -> (i32, i32, i32, i32) {
    %c0_i32 = arith.constant 0 : i32
    %c0_i32_0 = arith.constant 0 : i32
    %c0_i32_1 = arith.constant 0 : i32
    return %arg0, %c0_i32, %arg1, %c0_i32_0 : i32, i32, i32, i32
  }
  func.func @transform_8(%arg0: i32, %arg1: i32, %arg2: memref<2x2xi32, #tpu.memory_space<smem>>) -> (i32, i32, i32) {
    %c0_i32 = arith.constant 0 : i32
    %c0_i32_0 = arith.constant 0 : i32
    return %arg0, %arg1, %c0_i32 : i32, i32, i32
  }
}

</mosaic_0001>

<llo_original>
// kernel: tpu_custom_call.1
$region0: #{tpu_custom_call.1}
  #allocation0 [shape = 'u32[]', space=smem, size = 0x4, offset = 0x4, fixed_abs, tag = 'smem constant byte address 0x4 - core index']
  #allocation1 [shape = 'u32[144,128]{1,0:T(1,128)}', space=vmem, size = 0x12000, scoped, tag = 'internal scratch']
  #allocation2 [shape = 'bf16[8,32]{1,0:T(8,128)(2,1)}', space=vmem, size = 0x800, scoped, tag = 'scratch operand']
  #allocation3 [shape = 'bf16[8,32]{1,0:T(8,128)(2,1)}', space=vmem, size = 0x800, scoped, tag = 'scratch operand']
  #allocation4 [shape = 's32[1]{0}', space=sflag, size = 0x4, scoped, tag = 'scoped memory for tpu_custom_call.1']
  #allocation5 [shape = 'u8[1024]{0}', space=smem, size = 0x400, scoped, tag = 'prefetched SMEM operand 0']
  %s0 = inlined_call_operand.hbm [shape: s32[2,2], index: 0, kind: input, shape index: {}]
  %s1 = inlined_call_operand.hbm [shape: bf16[2,8,32], index: 1, kind: input, shape index: {}]
  %s2 = inlined_call_operand.hbm [shape: bf16[2,8,32], index: 2, kind: input, shape index: {}]
  %s3 = inlined_call_operand.hbm [shape: bf16[2,8,32], index: 3, kind: input, shape index: {}]
  %s4 = inlined_call_operand.hbm [shape: bf16[32,32], index: 4, kind: input, shape index: {}]
  %s5 = inlined_call_operand.vmem [shape: bf16[32,32], index: 5, kind: input, shape index: {}]
  %s6 = inlined_call_operand.hbm [shape: bf16[32,32], index: 6, kind: input, shape index: {}]
  %s7 = inlined_call_operand.hbm [shape: bf16[32,32], index: 7, kind: input, shape index: {}]
  %s8 = inlined_call_operand.hbm [shape: f32[2,2,8,8], index: 8, kind: output, shape index: {0}]
  %s9 = inlined_call_operand.hbm [shape: f32[2,8,32], index: 9, kind: output, shape index: {1}]
  %10 = xla_tuple %s8, %s9
  %s11 = sld [smem:[#allocation0]]
  $region97: #{tpu_custom_call.1} parent=0
    _
  %s13 = ssub.s32 1, %s11
  %s14 = scalar_select 0, %s13, %s11
  %16 = dma.hbm_to_smem %s0, 32, [#allocation5], [#allocation4]
  %17 = dma.done [#allocation4], 32
  %18 = sfence
  $region1: #{tpu_custom_call.1} parent=0
    #allocation6 [shape = 'u8[4096]{0}', space=vmem, size = 0x1000, scoped, tag = 'input window, operand 1']
    #allocation7 [shape = 's32[2]{0}', space=sflag, size = 0x8, scoped, tag = 'scoped memory for tpu_custom_call.1']
    #allocation8 [shape = 's32[2]{0}', space=sflag, size = 0x8, scoped, tag = 'scoped memory for tpu_custom_call.1']
    #allocation9 [shape = 'u8[4096]{0}', space=vmem, size = 0x1000, scoped, tag = 'input window, operand 2']
    #allocation10 [shape = 's32[2]{0}', space=sflag, size = 0x8, scoped, tag = 'scoped memory for tpu_custom_call.1']
    #allocation11 [shape = 'u8[4096]{0}', space=vmem, size = 0x1000, scoped, tag = 'input window, operand 3']
    #allocation12 [shape = 'u8[8192]{0}', space=vmem, size = 0x2000, scoped, tag = 'input window, operand 4, single buffered']
    #allocation13 [shape = 's32[1]{0}', space=sflag, size = 0x4, scoped, tag = 'scoped memory for tpu_custom_call.1']
    #allocation14 [shape = 'u8[8192]{0}', space=vmem, size = 0x2000, scoped, tag = 'input window, operand 6, single buffered']
    #allocation15 [shape = 'u8[8192]{0}', space=vmem, size = 0x2000, scoped, tag = 'input window, operand 7, single buffered']
    #allocation16 [shape = 's32[1]{0}', space=sflag, size = 0x4, scoped, tag = 'scoped memory for tpu_custom_call.1']
    #allocation17 [shape = 'u8[16384]{0}', space=vmem, size = 0x4000, scoped, tag = 'output window, operand 0']
    #allocation18 [shape = 'u8[8192]{0}', space=vmem, size = 0x2000, scoped, tag = 'output window, operand 1']
    #allocation19 [shape = 's32[2]{0}', space=sflag, size = 0x8, scoped, tag = 'scoped memory for tpu_custom_call.1']
    %19 = vsyncpa [#allocation7], 0
    %s20 = scalar_lea.sflag [#allocation7], 1
    %21 = vsyncpa %s20, 0
    %22 = vsyncpa [#allocation10], 0
    %s23 = scalar_lea.sflag [#allocation10], 1
    %24 = vsyncpa %s23, 0
    %25 = vsyncpa [#allocation13], 0
    %26 = vsyncpa [#allocation16], 0
    %27 = vsyncpa [#allocation8], 0
    %s28 = scalar_lea.sflag [#allocation8], 1
    %29 = vsyncpa %s28, 0
    %30 = vsyncpa [#allocation19], 0
    %s31 = scalar_lea.sflag [#allocation19], 1
    %32 = vsyncpa %s31, 0
    loop: start=0, step=1, limit=4
    $region2: #{tpu_custom_call.1} parent=1 // loop_pre_header
      _
    $region3: #{tpu_custom_call.1} parent=1 // loop_header
      %s34 = sphi 0, %s38
      %p35 = scmp.ge.s32.totalorder %s34, 4
      %s41 = sphi 0, %s53
      %s42 = sphi 0, %s49
      %s43 = sphi 0, %s41
      %s44 = sphi 0, %s42
      %s45 = sphi 0, %s43
      %s46 = sphi 0, %s44
      %s58 = sphi 0, %s60
      %s61 = sphi 0, %s58
      %s62 = sphi 0, %s61
      %s78 = sphi 0, %s62
      %s84 = sphi 0, %s86
      %s87 = sphi 0, %s84
      %s88 = sphi 0, %s87
      %s104 = sphi 0, %s88
      %s110 = sphi 0, %s112
      %s113 = sphi 0, %s110
      %s114 = sphi 0, %s113
      %s130 = sphi 0, %s114
      %s134 = sphi 0, %s134
      %s136 = sphi 0, %s134
      %s137 = sphi 0, %s136
      %s151 = sphi 0, %s137
      %s155 = sphi 0, %s155
      %s157 = sphi 0, %s155
      %s158 = sphi 0, %s157
      %s172 = sphi 0, %s158
      %s176 = sphi 0, %s176
      %s178 = sphi 0, %s176
      %s179 = sphi 0, %s178
      %s193 = sphi 0, %s179
      %s197 = sphi 0, %s197
      %s199 = sphi 0, %s197
      %s200 = sphi 0, %s199
      %s214 = sphi 0, %s200
      %s222 = sphi 0, %s224
      %s225 = sphi 0, %s222
      %s226 = sphi 0, %s225
      %s242 = sphi 0, %s226
      %s250 = sphi 0, %s252
      %s253 = sphi 0, %s250
      %s254 = sphi 0, %s253
      %s270 = sphi 0, %s254
    $region4: #{tpu_custom_call.1} parent=1 // loop_header_branch
      %37 = sbr.rel (%p35) target = $region8
    $region5: #{tpu_custom_call.1} parent=1 // loop_body
      %s39 = ssub.s32 %s34, 1
      %s40 = ssub.s32 %s34, 2
      %s47 = sadd.s32 1, %s42
      %p48 = scmp.ge.s32.totalorder %s47, 1
      %s49 = scalar_select %p48, 0, %s47
      %s50 = sadd.s32 1, %s41
      %s51 = scalar_select %p48, %s50, %s41
      %p52 = scmp.ge.s32.totalorder %s51, 2
      %s53 = scalar_select %p52, 0, %s51
      %s54 = ssub.s32 %s41, %s53
      %s55 = ssub.s32 %s42, %s49
      %s56 = sor.u32 %s54, %s55
      %p57 = scmp.eq.s32.totalorder %s56, 0
      %s59 = sadd.s32 %s58, 1
      %s60 = scalar_select %p57, %s58, %s59
      %p63 = pneg %p57
      %p64 = scmp.eq.s32.totalorder %s34, 1
      %p65 = por %p63, %p64
      %p66 = scmp.ne.s32.totalorder %s58, %s61
      %p67 = scmp.eq.s32.totalorder %s34, 0
      %p68 = por %p66, %p67
      %p69 = scmp.ne.s32.totalorder %s58, %s61
      %p70 = scmp.eq.s32.totalorder %s39, 1
      %p71 = por %p69, %p70
      %p72 = scmp.ne.s32.totalorder %s61, %s62
      %p73 = scmp.eq.s32.totalorder %s39, 0
      %p74 = por %p72, %p73
      %p75 = scmp.ne.s32.totalorder %s61, %s62
      %p76 = scmp.eq.s32.totalorder %s40, 1
      %p77 = por %p75, %p76
      %p79 = scmp.ne.s32.totalorder %s62, %s78
      %p80 = scmp.eq.s32.totalorder %s40, 0
      %p81 = por %p79, %p80
      %s82 = ssub.s32 %s41, %s53
      %p83 = scmp.eq.s32.totalorder %s82, 0
      %s85 = sadd.s32 %s84, 1
      %s86 = scalar_select %p83, %s84, %s85
      %p89 = pneg %p83
      %p90 = scmp.eq.s32.totalorder %s34, 1
      %p91 = por %p89, %p90
      %p92 = scmp.ne.s32.totalorder %s84, %s87
      %p93 = scmp.eq.s32.totalorder %s34, 0
      %p94 = por %p92, %p93
      %p95 = scmp.ne.s32.totalorder %s84, %s87
      %p96 = scmp.eq.s32.totalorder %s39, 1
      %p97 = por %p95, %p96
      %p98 = scmp.ne.s32.totalorder %s87, %s88
      %p99 = scmp.eq.s32.totalorder %s39, 0
      %p100 = por %p98, %p99
      %p101 = scmp.ne.s32.totalorder %s87, %s88
      %p102 = scmp.eq.s32.totalorder %s40, 1
      %p103 = por %p101, %p102
      %p105 = scmp.ne.s32.totalorder %s88, %s104
      %p106 = scmp.eq.s32.totalorder %s40, 0
      %p107 = por %p105, %p106
      %s108 = ssub.s32 %s41, %s53
      %p109 = scmp.eq.s32.totalorder %s108, 0
      %s111 = sadd.s32 %s110, 1
      %s112 = scalar_select %p109, %s110, %s111
      %p115 = pneg %p109
      %p116 = scmp.eq.s32.totalorder %s34, 1
      %p117 = por %p115, %p116
      %p118 = scmp.ne.s32.totalorder %s110, %s113
      %p119 = scmp.eq.s32.totalorder %s34, 0
      %p120 = por %p118, %p119
      %p121 = scmp.ne.s32.totalorder %s110, %s113
      %p122 = scmp.eq.s32.totalorder %s39, 1
      %p123 = por %p121, %p122
      %p124 = scmp.ne.s32.totalorder %s113, %s114
      %p125 = scmp.eq.s32.totalorder %s39, 0
      %p126 = por %p124, %p125
      %p127 = scmp.ne.s32.totalorder %s113, %s114
      %p128 = scmp.eq.s32.totalorder %s40, 1
      %p129 = por %p127, %p128
      %p131 = scmp.ne.s32.totalorder %s114, %s130
      %p132 = scmp.eq.s32.totalorder %s40, 0
      %p133 = por %p131, %p132
      %s135 = sadd.s32 %s134, 1
      %p138 = scmp.eq.s32.totalorder %s34, 1
      %p139 = scmp.ne.s32.totalorder %s134, %s136
      %p140 = scmp.eq.s32.totalorder %s34, 0
      %p141 = por %p139, %p140
      %p142 = scmp.ne.s32.totalorder %s134, %s136
      %p143 = scmp.eq.s32.totalorder %s39, 1
      %p144 = por %p142, %p143
      %p145 = scmp.ne.s32.totalorder %s136, %s137
      %p146 = scmp.eq.s32.totalorder %s39, 0
      %p147 = por %p145, %p146
      %p148 = scmp.ne.s32.totalorder %s136, %s137
      %p149 = scmp.eq.s32.totalorder %s40, 1
      %p150 = por %p148, %p149
      %p152 = scmp.ne.s32.totalorder %s137, %s151
      %p153 = scmp.eq.s32.totalorder %s40, 0
      %p154 = por %p152, %p153
      %s156 = sadd.s32 %s155, 1
      %p159 = scmp.eq.s32.totalorder %s34, 1
      %p160 = scmp.ne.s32.totalorder %s155, %s157
      %p161 = scmp.eq.s32.totalorder %s34, 0
      %p162 = por %p160, %p161
      %p163 = scmp.ne.s32.totalorder %s155, %s157
      %p164 = scmp.eq.s32.totalorder %s39, 1
      %p165 = por %p163, %p164
      %p166 = scmp.ne.s32.totalorder %s157, %s158
      %p167 = scmp.eq.s32.totalorder %s39, 0
      %p168 = por %p166, %p167
      %p169 = scmp.ne.s32.totalorder %s157, %s158
      %p170 = scmp.eq.s32.totalorder %s40, 1
      %p171 = por %p169, %p170
      %p173 = scmp.ne.s32.totalorder %s158, %s172
      %p174 = scmp.eq.s32.totalorder %s40, 0
      %p175 = por %p173, %p174
      %s177 = sadd.s32 %s176, 1
      %p180 = scmp.eq.s32.totalorder %s34, 1
      %p181 = scmp.ne.s32.totalorder %s176, %s178
      %p182 = scmp.eq.s32.totalorder %s34, 0
      %p183 = por %p181, %p182
      %p184 = scmp.ne.s32.totalorder %s176, %s178
      %p185 = scmp.eq.s32.totalorder %s39, 1
      %p186 = por %p184, %p185
      %p187 = scmp.ne.s32.totalorder %s178, %s179
      %p188 = scmp.eq.s32.totalorder %s39, 0
      %p189 = por %p187, %p188
      %p190 = scmp.ne.s32.totalorder %s178, %s179
      %p191 = scmp.eq.s32.totalorder %s40, 1
      %p192 = por %p190, %p191
      %p194 = scmp.ne.s32.totalorder %s179, %s193
      %p195 = scmp.eq.s32.totalorder %s40, 0
      %p196 = por %p194, %p195
      %s198 = sadd.s32 %s197, 1
      %p201 = scmp.eq.s32.totalorder %s34, 1
      %p202 = scmp.ne.s32.totalorder %s197, %s199
      %p203 = scmp.eq.s32.totalorder %s34, 0
      %p204 = por %p202, %p203
      %p205 = scmp.ne.s32.totalorder %s197, %s199
      %p206 = scmp.eq.s32.totalorder %s39, 1
      %p207 = por %p205, %p206
      %p208 = scmp.ne.s32.totalorder %s199, %s200
      %p209 = scmp.eq.s32.totalorder %s39, 0
      %p210 = por %p208, %p209
      %p211 = scmp.ne.s32.totalorder %s199, %s200
      %p212 = scmp.eq.s32.totalorder %s40, 1
      %p213 = por %p211, %p212
      %p215 = scmp.ne.s32.totalorder %s200, %s214
      %p216 = scmp.eq.s32.totalorder %s40, 0
      %p217 = por %p215, %p216
      %s218 = ssub.s32 %s41, %s53
      %s219 = ssub.s32 %s42, %s49
      %s220 = sor.u32 %s218, %s219
      %p221 = scmp.eq.s32.totalorder %s220, 0
      %s223 = sadd.s32 %s222, 1
      %s224 = scalar_select %p221, %s222, %s223
      %p227 = pneg %p221
      %p228 = scmp.eq.s32.totalorder %s34, 1
      %p229 = por %p227, %p228
      %p230 = scmp.ne.s32.totalorder %s222, %s225
      %p231 = scmp.eq.s32.totalorder %s34, 0
      %p232 = por %p230, %p231
      %p233 = scmp.ne.s32.totalorder %s222, %s225
      %p234 = scmp.eq.s32.totalorder %s39, 1
      %p235 = por %p233, %p234
      %p236 = scmp.ne.s32.totalorder %s225, %s226
      %p237 = scmp.eq.s32.totalorder %s39, 0
      %p238 = por %p236, %p237
      %p239 = scmp.ne.s32.totalorder %s225, %s226
      %p240 = scmp.eq.s32.totalorder %s40, 1
      %p241 = por %p239, %p240
      %p243 = scmp.ne.s32.totalorder %s226, %s242
      %p244 = scmp.eq.s32.totalorder %s40, 0
      %p245 = por %p243, %p244
      %s246 = ssub.s32 %s41, %s53
      %s247 = ssub.s32 %s42, %s49
      %s248 = sor.u32 %s246, %s247
      %p249 = scmp.eq.s32.totalorder %s248, 0
      %s251 = sadd.s32 %s250, 1
      %s252 = scalar_select %p249, %s250, %s251
      %p255 = pneg %p249
      %p256 = scmp.eq.s32.totalorder %s34, 1
      %p257 = por %p255, %p256
      %p258 = scmp.ne.s32.totalorder %s250, %s253
      %p259 = scmp.eq.s32.totalorder %s34, 0
      %p260 = por %p258, %p259
      %p261 = scmp.ne.s32.totalorder %s250, %s253
      %p262 = scmp.eq.s32.totalorder %s39, 1
      %p263 = por %p261, %p262
      %p264 = scmp.ne.s32.totalorder %s253, %s254
      %p265 = scmp.eq.s32.totalorder %s39, 0
      %p266 = por %p264, %p265
      %p267 = scmp.ne.s32.totalorder %s253, %s254
      %p268 = scmp.eq.s32.totalorder %s40, 1
      %p269 = por %p267, %p268
      %p271 = scmp.ne.s32.totalorder %s254, %s270
      %p272 = scmp.eq.s32.totalorder %s40, 0
      %p273 = por %p271, %p272
      %p274 = scmp.le.s32.totalorder 1, %s34
      %p275 = scmp.lt.s32.totalorder %s34, 3
      %p276 = pnand %p274, %p275
      %p277 = pneg %p276
      // Predicated region
      $region9: #{tpu_custom_call.1} parent=5 // pred_check
        _
      $region10: #{tpu_custom_call.1} parent=5 // pred_check_branch
        %279 = sbr.rel (%p276) target = $region12
      $region11: #{tpu_custom_call.1} parent=5 // pred_region
        %s280 = ssub.s32 %s34, 1
        // Predicated region
        $region13: #{tpu_custom_call.1} parent=11 // pred_check
          %p281 = pneg %p147
        $region14: #{tpu_custom_call.1} parent=11 // pred_check_branch
          %283 = sbr.rel (%p281) target = $region16
        $region15: #{tpu_custom_call.1} parent=11 // pred_region
          %s285 = ssub.s32 256, 256
          %286 = vsyncadd [#allocation13], %s285
          %s287 = sshll.u32 [#allocation12], 4
          %s288 = int_to_ptr.vmem [resolvable:$true] %s287
          %293 = dma.hbm_to_vmem [thread:$0]  %s4, 256, %s288, [#allocation13], 64, 64, 4
        $region16: #{tpu_custom_call.1} parent=11 // pred_fallthru
          _
        // Predicated region
        $region17: #{tpu_custom_call.1} parent=11 // pred_check
          %p294 = pneg %p168
        $region18: #{tpu_custom_call.1} parent=11 // pred_check_branch
          %296 = sbr.rel (%p294) target = $region20
        $region19: #{tpu_custom_call.1} parent=11 // pred_region
          _
        $region20: #{tpu_custom_call.1} parent=11 // pred_fallthru
          _
        // Predicated region
        $region21: #{tpu_custom_call.1} parent=11 // pred_check
          %p297 = pneg %p189
        $region22: #{tpu_custom_call.1} parent=11 // pred_check_branch
          %299 = sbr.rel (%p297) target = $region24
        $region23: #{tpu_custom_call.1} parent=11 // pred_region
          %s301 = ssub.s32 256, 256
          %302 = vsyncadd [#allocation13], %s301
          %s303 = sshll.u32 [#allocation14], 4
          %s304 = int_to_ptr.vmem [resolvable:$true] %s303
          %309 = dma.hbm_to_vmem [thread:$0]  %s6, 256, %s304, [#allocation13], 64, 64, 4
        $region24: #{tpu_custom_call.1} parent=11 // pred_fallthru
          _
        // Predicated region
        $region25: #{tpu_custom_call.1} parent=11 // pred_check
          %p310 = pneg %p210
        $region26: #{tpu_custom_call.1} parent=11 // pred_check_branch
          %312 = sbr.rel (%p310) target = $region28
        $region27: #{tpu_custom_call.1} parent=11 // pred_region
          %s314 = ssub.s32 256, 256
          %315 = vsyncadd [#allocation16], %s314
          %s316 = sshll.u32 [#allocation15], 4
          %s317 = int_to_ptr.vmem [resolvable:$true] %s316
          %322 = dma.hbm_to_vmem [thread:$0]  %s7, 256, %s317, [#allocation16], 64, 64, 4
        $region28: #{tpu_custom_call.1} parent=11 // pred_fallthru
          _
      $region12: #{tpu_custom_call.1} parent=5 // pred_fallthru
        _
      %p323 = scmp.lt.s32.totalorder %s34, 2
      // Predicated region
      $region29: #{tpu_custom_call.1} parent=5 // pred_check
        %p324 = pneg %p323
      $region30: #{tpu_custom_call.1} parent=5 // pred_check_branch
        %326 = sbr.rel (%p324) target = $region32
      $region31: #{tpu_custom_call.1} parent=5 // pred_region
        // Predicated region
        $region33: #{tpu_custom_call.1} parent=31 // pred_check
          %p327 = pneg %p68
        $region34: #{tpu_custom_call.1} parent=31 // pred_check_branch
          %329 = sbr.rel (%p327) target = $region36
        $region35: #{tpu_custom_call.1} parent=31 // pred_region
          %s330 = sand.u32 %s58, 1
          %s331 = scalar_lea.sflag [#allocation7], %s330
          %s332 = sand.u32 %s58, 1
          %s333 = smul.addr %s332, 4
          %s334 = scalar_lea.vmem [#allocation6], %s333
          %s336 = ssub.s32 64, 64
          %337 = vsyncadd %s331, %s336
          %s338 = sadd.s32 %s42, %s41
          %s339 = smul.addr %s338, 64
          %s340 = scalar_lea.hbm %s1, %s339
          %s342 = sshll.u32 %s334, 4
          %s343 = int_to_ptr.vmem [resolvable:$true] %s342
          %345 = dma.hbm_to_vmem [thread:$0]  %s340, 64, %s343, %s331
        $region36: #{tpu_custom_call.1} parent=31 // pred_fallthru
          _
        // Predicated region
        $region37: #{tpu_custom_call.1} parent=31 // pred_check
          %p346 = pneg %p94
        $region38: #{tpu_custom_call.1} parent=31 // pred_check_branch
          %348 = sbr.rel (%p346) target = $region40
        $region39: #{tpu_custom_call.1} parent=31 // pred_region
          %s349 = sand.u32 %s34, 1
          %s350 = scalar_lea.sflag [#allocation10], %s349
          %s351 = sand.u32 %s84, 1
          %s352 = smul.addr %s351, 4
          %s353 = scalar_lea.vmem [#allocation9], %s352
          %s355 = ssub.s32 64, 64
          %356 = vsyncadd %s350, %s355
          %s357 = smul.addr %s41, 64
          %s358 = scalar_lea.hbm %s2, %s357
          %s360 = sshll.u32 %s353, 4
          %s361 = int_to_ptr.vmem [resolvable:$true] %s360
          %363 = dma.hbm_to_vmem [thread:$0]  %s358, 64, %s361, %s350
        $region40: #{tpu_custom_call.1} parent=31 // pred_fallthru
          _
        // Predicated region
        $region41: #{tpu_custom_call.1} parent=31 // pred_check
          %p364 = pneg %p120
        $region42: #{tpu_custom_call.1} parent=31 // pred_check_branch
          %366 = sbr.rel (%p364) target = $region44
        $region43: #{tpu_custom_call.1} parent=31 // pred_region
          %s367 = sand.u32 %s34, 1
          %s368 = scalar_lea.sflag [#allocation10], %s367
          %s369 = sand.u32 %s110, 1
          %s370 = smul.addr %s369, 4
          %s371 = scalar_lea.vmem [#allocation11], %s370
          %s373 = ssub.s32 64, 64
          %374 = vsyncadd %s368, %s373
          %s375 = smul.addr %s41, 64
          %s376 = scalar_lea.hbm %s3, %s375
          %s378 = sshll.u32 %s371, 4
          %s379 = int_to_ptr.vmem [resolvable:$true] %s378
          %381 = dma.hbm_to_vmem [thread:$0]  %s376, 64, %s379, %s368
        $region44: #{tpu_custom_call.1} parent=31 // pred_fallthru
          _
      $region32: #{tpu_custom_call.1} parent=5 // pred_fallthru
        _
      %p382 = scmp.le.s32.totalorder 1, %s34
      %p383 = scmp.lt.s32.totalorder %s34, 3
      %p384 = pnand %p382, %p383
      %p385 = pneg %p384
      // Predicated region
      $region45: #{tpu_custom_call.1} parent=5 // pred_check
        _
      $region46: #{tpu_custom_call.1} parent=5 // pred_check_branch
        %387 = sbr.rel (%p384) target = $region48
      $region47: #{tpu_custom_call.1} parent=5 // pred_region
        %s388 = ssub.s32 %s34, 1
        %s389 = sand.u32 %s61, 1
        %s390 = scalar_lea.sflag [#allocation7], %s389
        %s391 = sand.u32 %s61, 1
        %s392 = smul.addr %s391, 4
        %s393 = scalar_lea.vmem [#allocation6], %s392
        // Predicated region
        $region49: #{tpu_custom_call.1} parent=47 // pred_check
          %p394 = pneg %p74
        $region50: #{tpu_custom_call.1} parent=47 // pred_check_branch
          %396 = sbr.rel (%p394) target = $region52
        $region51: #{tpu_custom_call.1} parent=47 // pred_region
          %397 = dma.done %s390, 64
        $region52: #{tpu_custom_call.1} parent=47 // pred_fallthru
          _
        %s398 = sand.u32 %s39, 1
        %s399 = scalar_lea.sflag [#allocation10], %s398
        %s400 = sand.u32 %s87, 1
        %s401 = smul.addr %s400, 4
        %s402 = scalar_lea.vmem [#allocation9], %s401
        // Predicated region
        $region53: #{tpu_custom_call.1} parent=47 // pred_check
          %p403 = pneg %p100
        $region54: #{tpu_custom_call.1} parent=47 // pred_check_branch
          %405 = sbr.rel (%p403) target = $region56
        $region55: #{tpu_custom_call.1} parent=47 // pred_region
          %406 = dma.done %s399, 64
        $region56: #{tpu_custom_call.1} parent=47 // pred_fallthru
          _
        %s407 = sand.u32 %s39, 1
        %s408 = scalar_lea.sflag [#allocation10], %s407
        %s409 = sand.u32 %s113, 1
        %s410 = smul.addr %s409, 4
        %s411 = scalar_lea.vmem [#allocation11], %s410
        // Predicated region
        $region57: #{tpu_custom_call.1} parent=47 // pred_check
          %p412 = pneg %p126
        $region58: #{tpu_custom_call.1} parent=47 // pred_check_branch
          %414 = sbr.rel (%p412) target = $region60
        $region59: #{tpu_custom_call.1} parent=47 // pred_region
          %415 = dma.done %s408, 64
        $region60: #{tpu_custom_call.1} parent=47 // pred_fallthru
          _
        // Predicated region
        $region61: #{tpu_custom_call.1} parent=47 // pred_check
          %p416 = pneg %p147
        $region62: #{tpu_custom_call.1} parent=47 // pred_check_branch
          %418 = sbr.rel (%p416) target = $region64
        $region63: #{tpu_custom_call.1} parent=47 // pred_region
          %419 = dma.done [#allocation13], 256
        $region64: #{tpu_custom_call.1} parent=47 // pred_fallthru
          _
        // Predicated region
        $region65: #{tpu_custom_call.1} parent=47 // pred_check
          %p420 = pneg %p189
        $region66: #{tpu_custom_call.1} parent=47 // pred_check_branch
          %422 = sbr.rel (%p420) target = $region68
        $region67: #{tpu_custom_call.1} parent=47 // pred_region
          %423 = dma.done [#allocation13], 256
        $region68: #{tpu_custom_call.1} parent=47 // pred_fallthru
          _
        // Predicated region
        $region69: #{tpu_custom_call.1} parent=47 // pred_check
          %p424 = pneg %p210
        $region70: #{tpu_custom_call.1} parent=47 // pred_check_branch
          %426 = sbr.rel (%p424) target = $region72
        $region71: #{tpu_custom_call.1} parent=47 // pred_region
          %427 = dma.done [#allocation16], 256
        $region72: #{tpu_custom_call.1} parent=47 // pred_fallthru
          _
        %s428 = sand.u32 %s61, 1
        %s429 = scalar_lea.sflag [#allocation7], %s428
        %s430 = sand.u32 %s61, 1
        %s431 = smul.addr %s430, 4
        %s432 = scalar_lea.vmem [#allocation6], %s431
        %p433 = pneg %p74
        %p434 = pneg %p71
        %s435 = sand.u32 %s39, 1
        %s436 = scalar_lea.sflag [#allocation10], %s435
        %s437 = sand.u32 %s87, 1
        %s438 = smul.addr %s437, 4
        %s439 = scalar_lea.vmem [#allocation9], %s438
        %p440 = pneg %p100
        %p441 = pneg %p97
        %s442 = sand.u32 %s39, 1
        %s443 = scalar_lea.sflag [#allocation10], %s442
        %s444 = sand.u32 %s113, 1
        %s445 = smul.addr %s444, 4
        %s446 = scalar_lea.vmem [#allocation11], %s445
        %p447 = pneg %p126
        %p448 = pneg %p123
        %p449 = pneg %p147
        %p450 = pneg %p144
        %p451 = pneg %p168
        %p452 = pneg %p165
        %p453 = pneg %p189
        %p454 = pneg %p186
        %p455 = pneg %p210
        %p456 = pneg %p207
        %p457 = pneg %p238
        %p458 = pneg %p235
        %s459 = sand.u32 %s225, 1
        %s460 = scalar_lea.sflag [#allocation8], %s459
        %s461 = sand.u32 %s225, 1
        %s462 = smul.addr %s461, 16
        %s463 = scalar_lea.vmem [#allocation17], %s462
        %p464 = pneg %p266
        %p465 = pneg %p263
        %s466 = sand.u32 %s253, 1
        %s467 = scalar_lea.sflag [#allocation19], %s466
        %s468 = sand.u32 %s253, 1
        %s469 = smul.addr %s468, 8
        %s470 = scalar_lea.vmem [#allocation18], %s469
        %p472 = scmp.eq.s32.totalorder %s44, 0
        // Predicated region
        $region73: #{tpu_custom_call.1} parent=47 // pred_check
          %p473 = pneg %p472
        $region74: #{tpu_custom_call.1} parent=47 // pred_check_branch
          %475 = sbr.rel (%p473) target = $region76
        $region75: #{tpu_custom_call.1} parent=47 // pred_region
          %v476 = vld [vmem:[%s402] sm:$0xf]
          %v477 = vld [vmem:[%s5] sm:$0xf]
          %v478 = vld [vmem:[%s5 + $0x4] sm:$0xf]
          %v479 = vld [vmem:[%s5 + $0x8] sm:$0xf]
          %v480 = vld [vmem:[%s5 + $0xc] sm:$0xf]
          %v485 = vunpack.c.l.b16 %v477
          %v486 = vunpack.c.l.b16 %v478
          %v487 = vunpack.c.l.b16 %v479
          %v488 = vunpack.c.l.b16 %v480
          %v489 = vpack.c.b16 %v486, %v485
          %v490 = vpack.c.b16 %v488, %v487
          %vm493 = vcmask 261120
          %v495 = vsel %vm493, %v476, 0
          %497 = vmatprep.subr.bf16.mxu0 0
          %498 = vmatpush1.bf16.msra.mxu0 %v489
          %499 = vmatprep.subr.bf16.mxu0 0
          %500 = vmatpush1.bf16.msra.mxu0 %v490
          %501 = vmatprep.subr.bf16.mxu0 0
          %502 = vmatpush1.bf16.msra.mxu0 0
          %503 = vmatprep.subr.bf16.mxu0 0
          %504 = vmatpush1.bf16.msra.mxu0 0
          %505 = vmatprep.subr.bf16.mxu0 0
          %506 = vmatpush1.bf16.msra.mxu0 0
          %507 = vmatprep.subr.bf16.mxu0 0
          %508 = vmatpush1.bf16.msra.mxu0 0
          %509 = vmatprep.subr.bf16.mxu0 0
          %510 = vmatpush1.bf16.msra.mxu0 0
          %511 = vmatprep.subr.bf16.mxu0 0
          %512 = vmatpush1.bf16.msra.mxu0 0
          %513 = vmatprep.subr.bf16.mxu0 0
          %514 = vmatpush1.bf16.msra.mxu0 0
          %515 = vmatprep.subr.bf16.mxu0 0
          %516 = vmatpush1.bf16.msra.mxu0 0
          %517 = vmatprep.subr.bf16.mxu0 0
          %518 = vmatpush1.bf16.msra.mxu0 0
          %519 = vmatprep.subr.bf16.mxu0 0
          %520 = vmatpush1.bf16.msra.mxu0 0
          %521 = vmatprep.subr.bf16.mxu0 0
          %522 = vmatpush1.bf16.msra.mxu0 0
          %523 = vmatprep.subr.bf16.mxu0 0
          %524 = vmatpush1.bf16.msra.mxu0 0
          %525 = vmatprep.subr.bf16.mxu0 0
          %526 = vmatpush1.bf16.msra.mxu0 0
          %527 = vmatprep.subr.bf16.mxu0 0
          %528 = vmatpush1.bf16.msra.mxu0 0
          %529 = vmatprep.mubr.bf16.mxu0 0
          %530 = vmatmul.mubr.bf16.gmra.mrb[0].mxu0 %v495
          %v531 = vpop.f32.mrb[0].mxu0
          %v532 = vadd.f32 0.0, %v531
          %v533 = vpop.f32.mrb[0].mxu0
          %v534 = vpop.f32.mrb[0].mxu0
          %v535 = vpop.f32.mrb[0].mxu0
          %536 = vdwg.mxu0
          %v537 = vpack.c.bf16 %v532, %v532
          %vm538 = vcmask 257024
          %539 = vst.msk [vmem:[#allocation2] sm:$0xf] %vm538, %v537
          %v540 = vld [vmem:[%s411] sm:$0xf]
          %v541 = vld [vmem:[#allocation14] sm:$0xf]
          %v542 = vld [vmem:[#allocation14 + $0x4] sm:$0xf]
          %v543 = vld [vmem:[#allocation14 + $0x8] sm:$0xf]
          %v544 = vld [vmem:[#allocation14 + $0xc] sm:$0xf]
          %v549 = vunpack.c.l.b16 %v541
          %v550 = vunpack.c.l.b16 %v542
          %v551 = vunpack.c.l.b16 %v543
          %v552 = vunpack.c.l.b16 %v544
          %v553 = vpack.c.b16 %v550, %v549
          %v554 = vpack.c.b16 %v552, %v551
          %v558 = vsel %vm493, %v540, 0
          %560 = vmatprep.subr.bf16.mxu0 0
          %561 = vmatpush1.bf16.msra.mxu0 %v553
          %562 = vmatprep.subr.bf16.mxu0 0
          %563 = vmatpush1.bf16.msra.mxu0 %v554
          %564 = vmatprep.subr.bf16.mxu0 0
          %565 = vmatpush1.bf16.msra.mxu0 0
          %566 = vmatprep.subr.bf16.mxu0 0
          %567 = vmatpush1.bf16.msra.mxu0 0
          %568 = vmatprep.subr.bf16.mxu0 0
          %569 = vmatpush1.bf16.msra.mxu0 0
          %570 = vmatprep.subr.bf16.mxu0 0
          %571 = vmatpush1.bf16.msra.mxu0 0
          %572 = vmatprep.subr.bf16.mxu0 0
          %573 = vmatpush1.bf16.msra.mxu0 0
          %574 = vmatprep.subr.bf16.mxu0 0
          %575 = vmatpush1.bf16.msra.mxu0 0
          %576 = vmatprep.subr.bf16.mxu0 0
          %577 = vmatpush1.bf16.msra.mxu0 0
          %578 = vmatprep.subr.bf16.mxu0 0
          %579 = vmatpush1.bf16.msra.mxu0 0
          %580 = vmatprep.subr.bf16.mxu0 0
          %581 = vmatpush1.bf16.msra.mxu0 0
          %582 = vmatprep.subr.bf16.mxu0 0
          %583 = vmatpush1.bf16.msra.mxu0 0
          %584 = vmatprep.subr.bf16.mxu0 0
          %585 = vmatpush1.bf16.msra.mxu0 0
          %586 = vmatprep.subr.bf16.mxu0 0
          %587 = vmatpush1.bf16.msra.mxu0 0
          %588 = vmatprep.subr.bf16.mxu0 0
          %589 = vmatpush1.bf16.msra.mxu0 0
          %590 = vmatprep.subr.bf16.mxu0 0
          %591 = vmatpush1.bf16.msra.mxu0 0
          %592 = vmatprep.mubr.bf16.mxu0 0
          %593 = vmatmul.mubr.bf16.gmra.mrb[0].mxu0 %v558
          %v594 = vpop.f32.mrb[0].mxu0
          %v595 = vadd.f32 0.0, %v594
          %v596 = vpop.f32.mrb[0].mxu0
          %v597 = vpop.f32.mrb[0].mxu0
          %v598 = vpop.f32.mrb[0].mxu0
          %599 = vdwg.mxu0
          %v600 = vpack.c.bf16 %v595, %v595
          %601 = vst.msk [vmem:[#allocation3] sm:$0xf] %vm538, %v600
        $region76: #{tpu_custom_call.1} parent=47 // pred_fallthru
          _
        %v602 = vld [vmem:[%s393] sm:$0xf]
        %v603 = vld [vmem:[#allocation12] sm:$0xf]
        %v604 = vld [vmem:[#allocation12 + $0x4] sm:$0xf]
        %v605 = vld [vmem:[#allocation12 + $0x8] sm:$0xf]
        %v606 = vld [vmem:[#allocation12 + $0xc] sm:$0xf]
        %v611 = vunpack.c.l.b16 %v603
        %v612 = vunpack.c.l.b16 %v604
        %v613 = vunpack.c.l.b16 %v605
        %v614 = vunpack.c.l.b16 %v606
        %v615 = vpack.c.b16 %v612, %v611
        %v616 = vpack.c.b16 %v614, %v613
        %vm619 = vcmask 261120
        %v621 = vsel %vm619, %v602, 0
        %623 = vmatprep.subr.bf16.mxu0 0
        %624 = vmatpush1.bf16.msra.mxu0 %v615
        %625 = vmatprep.subr.bf16.mxu0 0
        %626 = vmatpush1.bf16.msra.mxu0 %v616
        %627 = vmatprep.subr.bf16.mxu0 0
        %628 = vmatpush1.bf16.msra.mxu0 0
        %629 = vmatprep.subr.bf16.mxu0 0
        %630 = vmatpush1.bf16.msra.mxu0 0
        %631 = vmatprep.subr.bf16.mxu0 0
        %632 = vmatpush1.bf16.msra.mxu0 0
        %633 = vmatprep.subr.bf16.mxu0 0
        %634 = vmatpush1.bf16.msra.mxu0 0
        %635 = vmatprep.subr.bf16.mxu0 0
        %636 = vmatpush1.bf16.msra.mxu0 0
        %637 = vmatprep.subr.bf16.mxu0 0
        %638 = vmatpush1.bf16.msra.mxu0 0
        %639 = vmatprep.subr.bf16.mxu0 0
        %640 = vmatpush1.bf16.msra.mxu0 0
        %641 = vmatprep.subr.bf16.mxu0 0
        %642 = vmatpush1.bf16.msra.mxu0 0
        %643 = vmatprep.subr.bf16.mxu0 0
        %644 = vmatpush1.bf16.msra.mxu0 0
        %645 = vmatprep.subr.bf16.mxu0 0
        %646 = vmatpush1.bf16.msra.mxu0 0
        %647 = vmatprep.subr.bf16.mxu0 0
        %648 = vmatpush1.bf16.msra.mxu0 0
        %649 = vmatprep.subr.bf16.mxu0 0
        %650 = vmatpush1.bf16.msra.mxu0 0
        %651 = vmatprep.subr.bf16.mxu0 0
        %652 = vmatpush1.bf16.msra.mxu0 0
        %653 = vmatprep.subr.bf16.mxu0 0
        %654 = vmatpush1.bf16.msra.mxu0 0
        %655 = vmatprep.mubr.bf16.mxu0 0
        %656 = vmatmul.mubr.bf16.gmra.mrb[0].mxu0 %v621
        %v657 = vpop.f32.mrb[0].mxu0
        %v658 = vadd.f32 0.0, %v657
        %v659 = vpop.f32.mrb[0].mxu0
        %v660 = vpop.f32.mrb[0].mxu0
        %v661 = vpop.f32.mrb[0].mxu0
        %662 = vdwg.mxu0
        %v663 = vmul.f32 %v658, 0.25
        %v664 = vpack.c.bf16 %v663, %v663
        %v665 = vld [vmem:[#allocation2] sm:$0xf]
        %v666 = vld [vmem:[#allocation3] sm:$0xf]
        %vm667 = vcmask 130048
        %v669 = vsel %vm667, %v664, 0
        %v672 = vsel %vm667, %v665, 0
        %674 = vmatprep.subr.bf16.mxu0 0
        %675 = vmatpush1.bf16.xpose.msra.mxu0 %v672
        %676 = vmatprep.subr.bf16.mxu0 0
        %677 = vmatpush1.bf16.xpose.msra.mxu0 0
        %678 = vmatprep.subr.bf16.mxu0 0
        %679 = vmatpush1.bf16.xpose.msra.mxu0 0
        %680 = vmatprep.subr.bf16.mxu0 0
        %681 = vmatpush1.bf16.xpose.msra.mxu0 0
        %682 = vmatprep.subr.bf16.mxu0 0
        %683 = vmatpush1.bf16.xpose.msra.mxu0 0
        %684 = vmatprep.subr.bf16.mxu0 0
        %685 = vmatpush1.bf16.xpose.msra.mxu0 0
        %686 = vmatprep.subr.bf16.mxu0 0
        %687 = vmatpush1.bf16.xpose.msra.mxu0 0
        %688 = vmatprep.subr.bf16.mxu0 0
        %689 = vmatpush1.bf16.xpose.msra.mxu0 0
        %690 = vmatprep.subr.bf16.mxu0 0
        %691 = vmatpush1.bf16.xpose.msra.mxu0 0
        %692 = vmatprep.subr.bf16.mxu0 0
        %693 = vmatpush1.bf16.xpose.msra.mxu0 0
        %694 = vmatprep.subr.bf16.mxu0 0
        %695 = vmatpush1.bf16.xpose.msra.mxu0 0
        %696 = vmatprep.subr.bf16.mxu0 0
        %697 = vmatpush1.bf16.xpose.msra.mxu0 0
        %698 = vmatprep.subr.bf16.mxu0 0
        %699 = vmatpush1.bf16.xpose.msra.mxu0 0
        %700 = vmatprep.subr.bf16.mxu0 0
        %701 = vmatpush1.bf16.xpose.msra.mxu0 0
        %702 = vmatprep.subr.bf16.mxu0 0
        %703 = vmatpush1.bf16.xpose.msra.mxu0 0
        %704 = vmatprep.subr.bf16.mxu0 0
        %705 = vmatpush1.bf16.xpose.msra.mxu0 0
        %706 = vmatprep.mubr.bf16.mxu0 0
        %707 = vmatmul.mubr.bf16.gmra.mrb[0].mxu0 %v669
        %v708 = vpop.f32.mrb[0].mxu0
        %v709 = vadd.f32 0.0, %v708
        %v710 = vpop.f32.mrb[0].mxu0
        %v711 = vpop.f32.mrb[0].mxu0
        %v712 = vpop.f32.mrb[0].mxu0
        %713 = vdwg.mxu0
        %vm714 = vcmask 64512
        %v715 = vsel %vm714, %v709, -inf
        %716 = vmax.xlane.f32.xlu0 %v715
        %v717 = vpop.xlane.xlu0 %716
        %v718 = vsub.f32 %v709, %v717
        %v719 = vmul.f32 %v718, 1.442695
        %v720 = vpow.pop %v719
        %v721 = vsel %vm714, %v720, 0.0
        %722 = vadd.xlane.f32.xlu0 %v721
        %v723 = vpop.xlane.xlu0 %722
        %v724 = vrcp.pop %v723
        %v725 = vmul.f32 %v720, %v724
        %726 = vst.msk [vmem:[%s463] sm:$0xff] %vm714, %v725
        %v727 = vpack.c.bf16 %v725, %v725
        %v729 = vsel %vm714, %v727, 0
        %vm731 = vcmask 1043456
        %v733 = vsel %vm731, %v666, 0
        %735 = vmatprep.subr.bf16.mxu0 0
        %736 = vmatpush1.bf16.msra.mxu0 %v733
        %737 = vmatprep.subr.bf16.mxu0 0
        %738 = vmatpush1.bf16.msra.mxu0 0
        %739 = vmatprep.subr.bf16.mxu0 0
        %740 = vmatpush1.bf16.msra.mxu0 0
        %741 = vmatprep.subr.bf16.mxu0 0
        %742 = vmatpush1.bf16.msra.mxu0 0
        %743 = vmatprep.subr.bf16.mxu0 0
        %744 = vmatpush1.bf16.msra.mxu0 0
        %745 = vmatprep.subr.bf16.mxu0 0
        %746 = vmatpush1.bf16.msra.mxu0 0
        %747 = vmatprep.subr.bf16.mxu0 0
        %748 = vmatpush1.bf16.msra.mxu0 0
        %749 = vmatprep.subr.bf16.mxu0 0
        %750 = vmatpush1.bf16.msra.mxu0 0
        %751 = vmatprep.subr.bf16.mxu0 0
        %752 = vmatpush1.bf16.msra.mxu0 0
        %753 = vmatprep.subr.bf16.mxu0 0
        %754 = vmatpush1.bf16.msra.mxu0 0
        %755 = vmatprep.subr.bf16.mxu0 0
        %756 = vmatpush1.bf16.msra.mxu0 0
        %757 = vmatprep.subr.bf16.mxu0 0
        %758 = vmatpush1.bf16.msra.mxu0 0
        %759 = vmatprep.subr.bf16.mxu0 0
        %760 = vmatpush1.bf16.msra.mxu0 0
        %761 = vmatprep.subr.bf16.mxu0 0
        %762 = vmatpush1.bf16.msra.mxu0 0
        %763 = vmatprep.subr.bf16.mxu0 0
        %764 = vmatpush1.bf16.msra.mxu0 0
        %765 = vmatprep.subr.bf16.mxu0 0
        %766 = vmatpush1.bf16.msra.mxu0 0
        %767 = vmatprep.mubr.bf16.mxu0 0
        %768 = vmatmul.mubr.bf16.gmra.mrb[0].mxu0 %v729
        %v769 = vpop.f32.mrb[0].mxu0
        %v770 = vadd.f32 0.0, %v769
        %v771 = vpop.f32.mrb[0].mxu0
        %v772 = vpop.f32.mrb[0].mxu0
        %v773 = vpop.f32.mrb[0].mxu0
        %774 = vdwg.mxu0
        %v775 = vpack.c.bf16 %v770, %v770
        %v776 = vld [vmem:[#allocation15] sm:$0xf]
        %v777 = vld [vmem:[#allocation15 + $0x4] sm:$0xf]
        %v778 = vld [vmem:[#allocation2] sm:$0xf]
        %v779 = vld [vmem:[#allocation3] sm:$0xf]
        %781 = vrot.lane.b32.xlu0 %v664, 112
        %v782 = vpop.permute.xlu0 %781
        %v784 = vunpack.c.l.b16 %v778
        %v785 = vpack.c.b16 %v784, %v784
        %786 = vrot.lane.b32.xlu0 %v785, 112
        %v787 = vpop.permute.xlu0 %786
        %v789 = vsel %vm667, %v782, 0
        %v792 = vsel %vm667, %v787, 0
        %794 = vmatprep.subr.bf16.mxu0 0
        %795 = vmatpush1.bf16.xpose.msra.mxu0 %v792
        %796 = vmatprep.subr.bf16.mxu0 0
        %797 = vmatpush1.bf16.xpose.msra.mxu0 0
        %798 = vmatprep.subr.bf16.mxu0 0
        %799 = vmatpush1.bf16.xpose.msra.mxu0 0
        %800 = vmatprep.subr.bf16.mxu0 0
        %801 = vmatpush1.bf16.xpose.msra.mxu0 0
        %802 = vmatprep.subr.bf16.mxu0 0
        %803 = vmatpush1.bf16.xpose.msra.mxu0 0
        %804 = vmatprep.subr.bf16.mxu0 0
        %805 = vmatpush1.bf16.xpose.msra.mxu0 0
        %806 = vmatprep.subr.bf16.mxu0 0
        %807 = vmatpush1.bf16.xpose.msra.mxu0 0
        %808 = vmatprep.subr.bf16.mxu0 0
        %809 = vmatpush1.bf16.xpose.msra.mxu0 0
        %810 = vmatprep.subr.bf16.mxu0 0
        %811 = vmatpush1.bf16.xpose.msra.mxu0 0
        %812 = vmatprep.subr.bf16.mxu0 0
        %813 = vmatpush1.bf16.xpose.msra.mxu0 0
        %814 = vmatprep.subr.bf16.mxu0 0
        %815 = vmatpush1.bf16.xpose.msra.mxu0 0
        %816 = vmatprep.subr.bf16.mxu0 0
        %817 = vmatpush1.bf16.xpose.msra.mxu0 0
        %818 = vmatprep.subr.bf16.mxu0 0
        %819 = vmatpush1.bf16.xpose.msra.mxu0 0
        %820 = vmatprep.subr.bf16.mxu0 0
        %821 = vmatpush1.bf16.xpose.msra.mxu0 0
        %822 = vmatprep.subr.bf16.mxu0 0
        %823 = vmatpush1.bf16.xpose.msra.mxu0 0
        %824 = vmatprep.subr.bf16.mxu0 0
        %825 = vmatpush1.bf16.xpose.msra.mxu0 0
        %826 = vmatprep.mubr.bf16.mxu0 0
        %827 = vmatmul.mubr.bf16.gmra.mrb[0].mxu0 %v789
        %v828 = vpop.f32.mrb[0].mxu0
        %v829 = vadd.f32 0.0, %v828
        %v830 = vpop.f32.mrb[0].mxu0
        %v831 = vpop.f32.mrb[0].mxu0
        %v832 = vpop.f32.mrb[0].mxu0
        %833 = vdwg.mxu0
        %v834 = vsel %vm714, %v829, -inf
        %835 = vmax.xlane.f32.xlu0 %v834
        %v836 = vpop.xlane.xlu0 %835
        %v837 = vsub.f32 %v829, %v836
        %v838 = vmul.f32 %v837, 1.442695
        %v839 = vpow.pop %v838
        %v840 = vsel %vm714, %v839, 0.0
        %841 = vadd.xlane.f32.xlu0 %v840
        %v842 = vpop.xlane.xlu0 %841
        %v843 = vrcp.pop %v842
        %v844 = vmul.f32 %v839, %v843
        %s845 = scalar_lea.vmem %s463, 8 [#allocation17]
        %846 = vst.msk [vmem:[%s845] sm:$0xff] %vm714, %v844
        %v847 = vpack.c.bf16 %v844, %v844
        %v849 = vunpack.c.l.b16 %v779
        %v850 = vpack.c.b16 %v849, %v849
        %851 = vrot.lane.b32.xlu0 %v850, 112
        %v852 = vpop.permute.xlu0 %851
        %v854 = vsel %vm714, %v847, 0
        %v857 = vsel %vm731, %v852, 0
        %859 = vmatprep.subr.bf16.mxu0 0
        %860 = vmatpush1.bf16.msra.mxu0 %v857
        %861 = vmatprep.subr.bf16.mxu0 0
        %862 = vmatpush1.bf16.msra.mxu0 0
        %863 = vmatprep.subr.bf16.mxu0 0
        %864 = vmatpush1.bf16.msra.mxu0 0
        %865 = vmatprep.subr.bf16.mxu0 0
        %866 = vmatpush1.bf16.msra.mxu0 0
        %867 = vmatprep.subr.bf16.mxu0 0
        %868 = vmatpush1.bf16.msra.mxu0 0
        %869 = vmatprep.subr.bf16.mxu0 0
        %870 = vmatpush1.bf16.msra.mxu0 0
        %871 = vmatprep.subr.bf16.mxu0 0
        %872 = vmatpush1.bf16.msra.mxu0 0
        %873 = vmatprep.subr.bf16.mxu0 0
        %874 = vmatpush1.bf16.msra.mxu0 0
        %875 = vmatprep.subr.bf16.mxu0 0
        %876 = vmatpush1.bf16.msra.mxu0 0
        %877 = vmatprep.subr.bf16.mxu0 0
        %878 = vmatpush1.bf16.msra.mxu0 0
        %879 = vmatprep.subr.bf16.mxu0 0
        %880 = vmatpush1.bf16.msra.mxu0 0
        %881 = vmatprep.subr.bf16.mxu0 0
        %882 = vmatpush1.bf16.msra.mxu0 0
        %883 = vmatprep.subr.bf16.mxu0 0
        %884 = vmatpush1.bf16.msra.mxu0 0
        %885 = vmatprep.subr.bf16.mxu0 0
        %886 = vmatpush1.bf16.msra.mxu0 0
        %887 = vmatprep.subr.bf16.mxu0 0
        %888 = vmatpush1.bf16.msra.mxu0 0
        %889 = vmatprep.subr.bf16.mxu0 0
        %890 = vmatpush1.bf16.msra.mxu0 0
        %891 = vmatprep.mubr.bf16.mxu0 0
        %892 = vmatmul.mubr.bf16.gmra.mrb[0].mxu0 %v854
        %v893 = vpop.f32.mrb[0].mxu0
        %v894 = vadd.f32 0.0, %v893
        %v895 = vpop.f32.mrb[0].mxu0
        %v896 = vpop.f32.mrb[0].mxu0
        %v897 = vpop.f32.mrb[0].mxu0
        %898 = vdwg.mxu0
        %v899 = vpack.c.bf16 %v894, %v894
        %v900 = vld [vmem:[#allocation15 + $0x8] sm:$0xf]
        %v901 = vld [vmem:[#allocation15 + $0xc] sm:$0xf]
        %v904 = vunpack.c.l.b16 %v900
        %v905 = vunpack.c.l.b16 %v901
        %v906 = vpack.c.b16 %v905, %v904
        %v909 = vsel %vm667, %v899, 0
        %911 = vmatprep.subr.bf16.mxu0 0
        %912 = vmatpush1.bf16.msra.mxu0 %v906
        %913 = vmatprep.subr.bf16.mxu0 0
        %914 = vmatpush1.bf16.msra.mxu0 0
        %915 = vmatprep.subr.bf16.mxu0 0
        %916 = vmatpush1.bf16.msra.mxu0 0
        %917 = vmatprep.subr.bf16.mxu0 0
        %918 = vmatpush1.bf16.msra.mxu0 0
        %919 = vmatprep.subr.bf16.mxu0 0
        %920 = vmatpush1.bf16.msra.mxu0 0
        %921 = vmatprep.subr.bf16.mxu0 0
        %922 = vmatpush1.bf16.msra.mxu0 0
        %923 = vmatprep.subr.bf16.mxu0 0
        %924 = vmatpush1.bf16.msra.mxu0 0
        %925 = vmatprep.subr.bf16.mxu0 0
        %926 = vmatpush1.bf16.msra.mxu0 0
        %927 = vmatprep.subr.bf16.mxu0 0
        %928 = vmatpush1.bf16.msra.mxu0 0
        %929 = vmatprep.subr.bf16.mxu0 0
        %930 = vmatpush1.bf16.msra.mxu0 0
        %931 = vmatprep.subr.bf16.mxu0 0
        %932 = vmatpush1.bf16.msra.mxu0 0
        %933 = vmatprep.subr.bf16.mxu0 0
        %934 = vmatpush1.bf16.msra.mxu0 0
        %935 = vmatprep.subr.bf16.mxu0 0
        %936 = vmatpush1.bf16.msra.mxu0 0
        %937 = vmatprep.subr.bf16.mxu0 0
        %938 = vmatpush1.bf16.msra.mxu0 0
        %939 = vmatprep.subr.bf16.mxu0 0
        %940 = vmatpush1.bf16.msra.mxu0 0
        %941 = vmatprep.subr.bf16.mxu0 0
        %942 = vmatpush1.bf16.msra.mxu0 0
        %943 = vmatprep.mubr.bf16.mxu0 0
        %944 = vmatmul.mubr.bf16.gmra.mrb[0].mxu0 %v909
        %v945 = vpop.f32.mrb[0].mxu0
        %v946 = vadd.f32 0.0, %v945
        %v947 = vpop.f32.mrb[0].mxu0
        %v948 = vpop.f32.mrb[0].mxu0
        %v949 = vpop.f32.mrb[0].mxu0
        %950 = vdwg.mxu0
        %v953 = vunpack.c.l.b16 %v776
        %v954 = vunpack.c.l.b16 %v777
        %v955 = vpack.c.b16 %v954, %v953
        %v958 = vsel %vm667, %v775, 0
        %960 = vmatprep.subr.bf16.mxu0 0
        %961 = vmatpush1.bf16.msra.mxu0 %v955
        %962 = vmatprep.subr.bf16.mxu0 0
        %963 = vmatpush1.bf16.msra.mxu0 0
        %964 = vmatprep.subr.bf16.mxu0 0
        %965 = vmatpush1.bf16.msra.mxu0 0
        %966 = vmatprep.subr.bf16.mxu0 0
        %967 = vmatpush1.bf16.msra.mxu0 0
        %968 = vmatprep.subr.bf16.mxu0 0
        %969 = vmatpush1.bf16.msra.mxu0 0
        %970 = vmatprep.subr.bf16.mxu0 0
        %971 = vmatpush1.bf16.msra.mxu0 0
        %972 = vmatprep.subr.bf16.mxu0 0
        %973 = vmatpush1.bf16.msra.mxu0 0
        %974 = vmatprep.subr.bf16.mxu0 0
        %975 = vmatpush1.bf16.msra.mxu0 0
        %976 = vmatprep.subr.bf16.mxu0 0
        %977 = vmatpush1.bf16.msra.mxu0 0
        %978 = vmatprep.subr.bf16.mxu0 0
        %979 = vmatpush1.bf16.msra.mxu0 0
        %980 = vmatprep.subr.bf16.mxu0 0
        %981 = vmatpush1.bf16.msra.mxu0 0
        %982 = vmatprep.subr.bf16.mxu0 0
        %983 = vmatpush1.bf16.msra.mxu0 0
        %984 = vmatprep.subr.bf16.mxu0 0
        %985 = vmatpush1.bf16.msra.mxu0 0
        %986 = vmatprep.subr.bf16.mxu0 0
        %987 = vmatpush1.bf16.msra.mxu0 0
        %988 = vmatprep.subr.bf16.mxu0 0
        %989 = vmatpush1.bf16.msra.mxu0 0
        %990 = vmatprep.subr.bf16.mxu0 0
        %991 = vmatpush1.bf16.msra.mxu0 0
        %992 = vmatprep.mubr.bf16.mxu0 0
        %993 = vmatmul.mubr.bf16.gmra.mrb[0].mxu0 %v958
        %v994 = vpop.f32.mrb[0].mxu0
        %v995 = vadd.f32 %v946, %v994
        %v996 = vpop.f32.mrb[0].mxu0
        %v997 = vpop.f32.mrb[0].mxu0
        %v998 = vpop.f32.mrb[0].mxu0
        %999 = vdwg.mxu0
        %1000 = vst.msk [vmem:[%s470] sm:$0xff] %vm619, %v995
        %s1001 = sand.u32 %s225, 1
        %s1002 = scalar_lea.sflag [#allocation8], %s1001
        %s1003 = sand.u32 %s225, 1
        %s1004 = smul.addr %s1003, 16
        %s1005 = scalar_lea.vmem [#allocation17], %s1004
        %s1006 = sand.u32 %s253, 1
        %s1007 = scalar_lea.sflag [#allocation19], %s1006
        %s1008 = sand.u32 %s253, 1
        %s1009 = smul.addr %s1008, 8
        %s1010 = scalar_lea.vmem [#allocation18], %s1009
        // Predicated region
        $region77: #{tpu_custom_call.1} parent=47 // pred_check
          %p1011 = pneg %p235
        $region78: #{tpu_custom_call.1} parent=47 // pred_check_branch
          %1013 = sbr.rel (%p1011) target = $region80
        $region79: #{tpu_custom_call.1} parent=47 // pred_region
          %s1015 = ssub.s32 256, 256
          %1016 = vsyncadd %s1002, %s1015
          %s1017 = smul.addr %s43, 2
          %s1018 = sadd.s32 %s44, %s1017
          %s1019 = smul.addr %s1018, 128
          %s1020 = scalar_lea.hbm %s8, %s1019
          %s1021 = sshll.u32 %s1005, 4
          %s1022 = int_to_ptr.vmem [resolvable:$true] %s1021
          %1027 = dma.vmem_to_hbm [thread:$0]  %s1022, 256, %s1020, %s1002, 128, 128, 8
        $region80: #{tpu_custom_call.1} parent=47 // pred_fallthru
          _
        // Predicated region
        $region81: #{tpu_custom_call.1} parent=47 // pred_check
          %p1028 = pneg %p263
        $region82: #{tpu_custom_call.1} parent=47 // pred_check_branch
          %1030 = sbr.rel (%p1028) target = $region84
        $region83: #{tpu_custom_call.1} parent=47 // pred_region
          %s1032 = ssub.s32 128, 128
          %1033 = vsyncadd %s1007, %s1032
          %s1034 = sadd.s32 %s44, %s43
          %s1035 = smul.addr %s1034, 128
          %s1036 = scalar_lea.hbm %s9, %s1035
          %s1038 = sshll.u32 %s1010, 4
          %s1039 = int_to_ptr.vmem [resolvable:$true] %s1038
          %1041 = dma.vmem_to_hbm [thread:$0]  %s1039, 128, %s1036, %s1007
        $region84: #{tpu_custom_call.1} parent=47 // pred_fallthru
          _
      $region48: #{tpu_custom_call.1} parent=5 // pred_fallthru
        _
      %p1042 = scmp.le.s32.totalorder 2, %s34
      // Predicated region
      $region85: #{tpu_custom_call.1} parent=5 // pred_check
        %p1043 = pneg %p1042
      $region86: #{tpu_custom_call.1} parent=5 // pred_check_branch
        %1045 = sbr.rel (%p1043) target = $region88
      $region87: #{tpu_custom_call.1} parent=5 // pred_region
        %s1046 = ssub.s32 %s34, 2
        // Predicated region
        $region89: #{tpu_custom_call.1} parent=87 // pred_check
          %p1047 = pneg %p241
        $region90: #{tpu_custom_call.1} parent=87 // pred_check_branch
          %1049 = sbr.rel (%p1047) target = $region92
        $region91: #{tpu_custom_call.1} parent=87 // pred_region
          %s1050 = sand.u32 %s226, 1
          %s1051 = scalar_lea.sflag [#allocation8], %s1050
          %s1052 = sand.u32 %s226, 1
          %s1053 = smul.addr %s1052, 16
          %s1054 = scalar_lea.vmem [#allocation17], %s1053
          %1055 = dma.done %s1051, 256
        $region92: #{tpu_custom_call.1} parent=87 // pred_fallthru
          _
        // Predicated region
        $region93: #{tpu_custom_call.1} parent=87 // pred_check
          %p1056 = pneg %p269
        $region94: #{tpu_custom_call.1} parent=87 // pred_check_branch
          %1058 = sbr.rel (%p1056) target = $region96
        $region95: #{tpu_custom_call.1} parent=87 // pred_region
          %s1059 = sand.u32 %s254, 1
          %s1060 = scalar_lea.sflag [#allocation19], %s1059
          %s1061 = sand.u32 %s254, 1
          %s1062 = smul.addr %s1061, 8
          %s1063 = scalar_lea.vmem [#allocation18], %s1062
          %1064 = dma.done %s1060, 128
        $region96: #{tpu_custom_call.1} parent=87 // pred_fallthru
          _
      $region88: #{tpu_custom_call.1} parent=5 // pred_fallthru
        _
    $region6: #{tpu_custom_call.1} parent=1 // loop_footer
      %s38 = sadd.s32 1, %s34
    $region7: #{tpu_custom_call.1} parent=1 // loop_footer_branch
      %33 = sbr.rel target = $region3
    $region8: #{tpu_custom_call.1} parent=1 // loop_exit
      _
    %1065 = vsyncpa [#allocation7], 1
    %s1066 = scalar_lea.sflag [#allocation7], 1
    %1067 = vsyncpa %s1066, 1
    %1068 = vsyncpa [#allocation10], 1
    %s1069 = scalar_lea.sflag [#allocation10], 1
    %1070 = vsyncpa %s1069, 1
    %1071 = vsyncpa [#allocation13], 1
    %1072 = vsyncpa [#allocation16], 1
    %1073 = vsyncpa [#allocation8], 1
    %s1074 = scalar_lea.sflag [#allocation8], 1
    %1075 = vsyncpa %s1074, 1
    %1076 = vsyncpa [#allocation19], 1
    %s1077 = scalar_lea.sflag [#allocation19], 1
    %1078 = vsyncpa %s1077, 1

</llo_original>
